<compile_context>
chip_gen: v7x
topology: tpu7x:2x2x1
jax: 0.10.0
libtpu: 0.0.40
codegen_flags: <defaults>
</compile_context>

<pallas_src>
from functools import partial

import jax
import jax.numpy as jnp
from jax.experimental import pallas as pl


def attention_kernel(x_ref, wqkv_ref, bqkv_ref, sel_ref, exp_ref,
                     rq_ref, rk_ref, rsum_ref, wout_ref, bout_ref, o_ref,
                     *, batch, heads, scale):
    # x_ref: (B*N, D); wqkv: (D, 3D); bqkv: (1, 3D); sel: (D, H); exp: (H, D)
    # rq/rk: (B*N*N, B*N) one-hot row replicators; rsum: (B*N, B*N*N) row summer
    # wout: (D, D); bout: (1, D); o_ref: (B*N, D)
    BN, D = x_ref.shape
    N = BN // batch
    H = heads
    f32 = jnp.float32

    # 1) Fused QKV projection: single lane-dense MXU push.
    qkv = jnp.dot(x_ref[...], wqkv_ref[...], preferred_element_type=f32) + bqkv_ref[...]
    q = qkv[:, :D]
    k = qkv[:, D:2 * D]
    v = qkv[:, 2 * D:3 * D]

    # 2) Row replication via one-hot matmuls (no transposes / broadcasts / gathers):
    #    Qr[(b,i,j), :] = q[(b,i), :]    Kr/Vr[(b,i,j), :] = k/v[(b,j), :]
    rq = rq_ref[...]
    rk = rk_ref[...]
    Qr = jnp.dot(rq, q, preferred_element_type=f32)            # (BN*N, D)
    Kr = jnp.dot(rk, k, preferred_element_type=f32)            # (BN*N, D)
    Vr = jnp.dot(rk, v, preferred_element_type=f32)            # (BN*N, D)

    # 3) Per-head logits without per-head tensors:
    #    dots[(b,i,j), h] = sum_c Qr*Kr * sel[c, h]   (sel = head one-hot)
    dots = jnp.dot(Qr * Kr, sel_ref[...], preferred_element_type=f32) * scale   # (BN*N, H)

    # 4) Numerically-stable softmax over keys j (rows grouped in blocks of N).
    m = jnp.max(dots.reshape(BN, N, H), axis=1)                # (BN, H)
    m_rep = jnp.dot(rq, m, preferred_element_type=f32)         # (BN*N, H) group-broadcast
    e = jnp.exp(dots - m_rep)                                  # unnormalized probs
    l = jnp.dot(rsum_ref[...], e, preferred_element_type=f32)  # (BN, H) denominators

    # 5) attn @ V with the head merge folded in and deferred exact normalization:
    #    eexp[(b,i,j), c] = e[(b,i,j), head(c)];  o_un[(b,i), c] = sum_j eexp * Vr
    eexp = jnp.dot(e, exp_ref[...], preferred_element_type=f32)            # (BN*N, D)
    o_un = jnp.dot(rsum_ref[...], eexp * Vr, preferred_element_type=f32)   # (BN, D)
    l_lane = jnp.dot(l, exp_ref[...], preferred_element_type=f32)          # (BN, D)
    o = o_un / l_lane                                                      # exact divide

    # 6) Output projection: single lane-dense MXU push, single lane-dense store.
    out = jnp.dot(o, wout_ref[...], preferred_element_type=f32) + bout_ref[...]
    o_ref[...] = out.astype(o_ref.dtype)


@partial(jax.jit, static_argnames=("heads",))
def attention_forward(x, w_qkv, b_qkv, w_out, b_out, heads):
    B, N, D = x.shape
    dh = D // heads
    BN = B * N
    scale = float(D) ** (-0.5)                       # matches PyTorch: dim ** -0.5
    dt = x.dtype

    # Shape-derived one-hot constants (constant-folded by XLA at trace time).
    cols = jnp.arange(D, dtype=jnp.int32)
    sel = (cols[:, None] // dh == jnp.arange(heads, dtype=jnp.int32)[None, :]).astype(dt)   # (D, H)
    expmat = sel.T                                                                          # (H, D)

    rows = jnp.arange(BN * N, dtype=jnp.int32)       # row index r = (b*N + i)*N + j
    bi = rows // N                                   # query row  (b*N + i)
    kv_row = (bi // N) * N + (rows % N)              # key row    (b*N + j)
    all_rows = jnp.arange(BN, dtype=jnp.int32)
    rq = (bi[:, None] == all_rows[None, :]).astype(dt)       # (BN*N, BN)
    rk = (kv_row[:, None] == all_rows[None, :]).astype(dt)   # (BN*N, BN)
    rsum = rq.T                                               # (BN, BN*N)

    kernel = partial(attention_kernel, batch=B, heads=heads, scale=scale)
    # Grid-less single invocation: every operand is tiny and lives whole in
    # VMEM (default full-array specs) -> zero grid-step pipeline overhead.
    out2d = pl.pallas_call(
        kernel,
        out_shape=jax.ShapeDtypeStruct((BN, D), dt),
    )(x.reshape(BN, D), w_qkv, b_qkv, sel, expmat, rq, rk, rsum, w_out, b_out)
    return out2d.reshape(B, N, D)


def reference_forward(x, w_qkv, b_qkv, w_out, b_out, heads):
    """Pure-JAX reference mirroring the PyTorch forward (mask=None, eval dropout)."""
    B, N, D = x.shape
    scale = float(D) ** (-0.5)
    qkv = x @ w_qkv + b_qkv[0]
    q, k, v = jnp.split(qkv, 3, axis=-1)

    def split_heads(t):
        return t.reshape(B, N, heads, D // heads).transpose(0, 2, 1, 3)

    q, k, v = map(split_heads, (q, k, v))
    dots = jnp.einsum('bhid,bhjd->bhij', q, k) * scale
    attn = jax.nn.softmax(dots, axis=-1)
    out = jnp.einsum('bhij,bhjd->bhid', attn, v)
    out = out.transpose(0, 2, 1, 3).reshape(B, N, D)
    return out @ w_out + b_out[0]


if __name__ == "__main__":
    # Matches the Attention config inside synergisticNet: dim=64, heads=16.
    B, N, D, HEADS = 2, 8, 64, 16

    key = jax.random.PRNGKey(0)
    kx, kwq, kbq, kwo, kbo = jax.random.split(key, 5)

    x = jax.random.normal(kx, (B, N, D), dtype=jnp.float32)
    bound = 1.0 / (D ** 0.5)
    w_qkv = jax.random.uniform(kwq, (D, 3 * D), minval=-bound, maxval=bound, dtype=jnp.float32)
    b_qkv = jax.random.uniform(kbq, (1, 3 * D), minval=-bound, maxval=bound, dtype=jnp.float32)
    w_out = jax.random.uniform(kwo, (D, D), minval=-bound, maxval=bound, dtype=jnp.float32)
    b_out = jax.random.uniform(kbo, (1, D), minval=-bound, maxval=bound, dtype=jnp.float32)

    y = attention_forward(x, w_qkv, b_qkv, w_out, b_out, heads=HEADS)
    y = jax.block_until_ready(y)

    y_ref = reference_forward(x, w_qkv, b_qkv, w_out, b_out, HEADS)
    assert y.shape == (B, N, D)
    # Exact softmax division restored (no approx reciprocal) -> back to ~f32
    # agreement with the reference (only accumulation-order rounding remains).
    assert jnp.allclose(y, y_ref, atol=1e-4, rtol=1e-4), "Pallas kernel mismatch vs reference"

    print("KERNEL_OK")
</pallas_src>

<mosaic_0001>
module attributes {stable_mosaic.version = 11 : i64} {
  func.func @attention_kernel(%arg0: memref<16x64xf32, #tpu.memory_space<vmem>>, %arg1: memref<64x192xf32, #tpu.memory_space<vmem>>, %arg2: memref<1x192xf32, #tpu.memory_space<vmem>>, %arg3: memref<64x16xf32, #tpu.memory_space<vmem>>, %arg4: memref<16x64xf32, #tpu.memory_space<vmem>>, %arg5: memref<128x16xf32, #tpu.memory_space<vmem>>, %arg6: memref<128x16xf32, #tpu.memory_space<vmem>>, %arg7: memref<16x128xf32, #tpu.memory_space<vmem>>, %arg8: memref<64x64xf32, #tpu.memory_space<vmem>>, %arg9: memref<1x64xf32, #tpu.memory_space<vmem>>, %arg10: memref<16x64xf32, #tpu.memory_space<vmem>>) attributes {dimension_semantics = [], scalar_prefetch = 0 : i64, scratch_operands = 0 : i64, tpu.core_type = #tpu.core_type<tc>} {
    %c0 = arith.constant 0 : index
    %c0_0 = arith.constant 0 : index
    %0 = vector.load %arg0[%c0, %c0_0] : memref<16x64xf32, #tpu.memory_space<vmem>>, vector<16x64xf32>
    %c0_1 = arith.constant 0 : index
    %c0_2 = arith.constant 0 : index
    %1 = vector.load %arg1[%c0_1, %c0_2] : memref<64x192xf32, #tpu.memory_space<vmem>>, vector<64x192xf32>
    %cst = arith.constant dense<0.000000e+00> : vector<16x192xf32>
    %2 = tpu.matmul %0, %1, %cst {dimension_numbers = #tpu.dot_dimension_numbers<[1], [0], [0], [1], [0, 0, 1, 1], [], []>} : vector<16x64xf32>, vector<64x192xf32>, vector<16x192xf32> -> vector<16x192xf32>
    %c0_3 = arith.constant 0 : index
    %c0_4 = arith.constant 0 : index
    %3 = vector.load %arg2[%c0_3, %c0_4] : memref<1x192xf32, #tpu.memory_space<vmem>>, vector<1x192xf32>
    %4 = vector.broadcast %3 : vector<1x192xf32> to vector<16x192xf32>
    %5 = arith.addf %2, %4 : vector<16x192xf32>
    %6 = vector.extract_strided_slice %5 {offsets = [0, 0], sizes = [16, 64], strides = [1, 1]} : vector<16x192xf32> to vector<16x64xf32>
    %7 = vector.extract_strided_slice %5 {offsets = [0, 64], sizes = [16, 64], strides = [1, 1]} : vector<16x192xf32> to vector<16x64xf32>
    %8 = vector.extract_strided_slice %5 {offsets = [0, 128], sizes = [16, 64], strides = [1, 1]} : vector<16x192xf32> to vector<16x64xf32>
    %c0_5 = arith.constant 0 : index
    %c0_6 = arith.constant 0 : index
    %9 = vector.load %arg5[%c0_5, %c0_6] : memref<128x16xf32, #tpu.memory_space<vmem>>, vector<128x16xf32>
    %c0_7 = arith.constant 0 : index
    %c0_8 = arith.constant 0 : index
    %10 = vector.load %arg6[%c0_7, %c0_8] : memref<128x16xf32, #tpu.memory_space<vmem>>, vector<128x16xf32>
    %cst_9 = arith.constant dense<0.000000e+00> : vector<128x64xf32>
    %11 = tpu.matmul %9, %6, %cst_9 {dimension_numbers = #tpu.dot_dimension_numbers<[1], [0], [0], [1], [0, 0, 1, 1], [], []>} : vector<128x16xf32>, vector<16x64xf32>, vector<128x64xf32> -> vector<128x64xf32>
    %cst_10 = arith.constant dense<0.000000e+00> : vector<128x64xf32>
    %12 = tpu.matmul %10, %7, %cst_10 {dimension_numbers = #tpu.dot_dimension_numbers<[1], [0], [0], [1], [0, 0, 1, 1], [], []>} : vector<128x16xf32>, vector<16x64xf32>, vector<128x64xf32> -> vector<128x64xf32>
    %cst_11 = arith.constant dense<0.000000e+00> : vector<128x64xf32>
    %13 = tpu.matmul %10, %8, %cst_11 {dimension_numbers = #tpu.dot_dimension_numbers<[1], [0], [0], [1], [0, 0, 1, 1], [], []>} : vector<128x16xf32>, vector<16x64xf32>, vector<128x64xf32> -> vector<128x64xf32>
    %14 = arith.mulf %11, %12 : vector<128x64xf32>
    %c0_12 = arith.constant 0 : index
    %c0_13 = arith.constant 0 : index
    %15 = vector.load %arg3[%c0_12, %c0_13] : memref<64x16xf32, #tpu.memory_space<vmem>>, vector<64x16xf32>
    %cst_14 = arith.constant dense<0.000000e+00> : vector<128x16xf32>
    %16 = tpu.matmul %14, %15, %cst_14 {dimension_numbers = #tpu.dot_dimension_numbers<[1], [0], [0], [1], [0, 0, 1, 1], [], []>} : vector<128x64xf32>, vector<64x16xf32>, vector<128x16xf32> -> vector<128x16xf32>
    %cst_15 = arith.constant 1.250000e-01 : f32
    %17 = vector.broadcast %cst_15 : f32 to vector<128x16xf32>
    %18 = arith.mulf %16, %17 : vector<128x16xf32>
    %19 = vector.shape_cast %18 : vector<128x16xf32> to vector<16x8x16xf32>
    %cst_16 = arith.constant dense<0xFF800000> : vector<16x16xf32>
    %20 = vector.multi_reduction <maximumf>, %19, %cst_16 [1] : vector<16x8x16xf32> to vector<16x16xf32>
    %cst_17 = arith.constant dense<0.000000e+00> : vector<128x16xf32>
    %21 = tpu.matmul %9, %20, %cst_17 {dimension_numbers = #tpu.dot_dimension_numbers<[1], [0], [0], [1], [0, 0, 1, 1], [], []>} : vector<128x16xf32>, vector<16x16xf32>, vector<128x16xf32> -> vector<128x16xf32>
    %22 = arith.subf %18, %21 : vector<128x16xf32>
    %23 = math.exp %22 : vector<128x16xf32>
    %c0_18 = arith.constant 0 : index
    %c0_19 = arith.constant 0 : index
    %24 = vector.load %arg7[%c0_18, %c0_19] : memref<16x128xf32, #tpu.memory_space<vmem>>, vector<16x128xf32>
    %cst_20 = arith.constant dense<0.000000e+00> : vector<16x16xf32>
    %25 = tpu.matmul %24, %23, %cst_20 {dimension_numbers = #tpu.dot_dimension_numbers<[1], [0], [0], [1], [0, 0, 1, 1], [], []>} : vector<16x128xf32>, vector<128x16xf32>, vector<16x16xf32> -> vector<16x16xf32>
    %c0_21 = arith.constant 0 : index
    %c0_22 = arith.constant 0 : index
    %26 = vector.load %arg4[%c0_21, %c0_22] : memref<16x64xf32, #tpu.memory_space<vmem>>, vector<16x64xf32>
    %cst_23 = arith.constant dense<0.000000e+00> : vector<128x64xf32>
    %27 = tpu.matmul %23, %26, %cst_23 {dimension_numbers = #tpu.dot_dimension_numbers<[1], [0], [0], [1], [0, 0, 1, 1], [], []>} : vector<128x16xf32>, vector<16x64xf32>, vector<128x64xf32> -> vector<128x64xf32>
    %c0_24 = arith.constant 0 : index
    %c0_25 = arith.constant 0 : index
    %28 = vector.load %arg7[%c0_24, %c0_25] : memref<16x128xf32, #tpu.memory_space<vmem>>, vector<16x128xf32>
    %29 = arith.mulf %27, %13 : vector<128x64xf32>
    %cst_26 = arith.constant dense<0.000000e+00> : vector<16x64xf32>
    %30 = tpu.matmul %28, %29, %cst_26 {dimension_numbers = #tpu.dot_dimension_numbers<[1], [0], [0], [1], [0, 0, 1, 1], [], []>} : vector<16x128xf32>, vector<128x64xf32>, vector<16x64xf32> -> vector<16x64xf32>
    %c0_27 = arith.constant 0 : index
    %c0_28 = arith.constant 0 : index
    %31 = vector.load %arg4[%c0_27, %c0_28] : memref<16x64xf32, #tpu.memory_space<vmem>>, vector<16x64xf32>
    %cst_29 = arith.constant dense<0.000000e+00> : vector<16x64xf32>
    %32 = tpu.matmul %25, %31, %cst_29 {dimension_numbers = #tpu.dot_dimension_numbers<[1], [0], [0], [1], [0, 0, 1, 1], [], []>} : vector<16x16xf32>, vector<16x64xf32>, vector<16x64xf32> -> vector<16x64xf32>
    %33 = arith.divf %30, %32 : vector<16x64xf32>
    %c0_30 = arith.constant 0 : index
    %c0_31 = arith.constant 0 : index
    %34 = vector.load %arg8[%c0_30, %c0_31] : memref<64x64xf32, #tpu.memory_space<vmem>>, vector<64x64xf32>
    %cst_32 = arith.constant dense<0.000000e+00> : vector<16x64xf32>
    %35 = tpu.matmul %33, %34, %cst_32 {dimension_numbers = #tpu.dot_dimension_numbers<[1], [0], [0], [1], [0, 0, 1, 1], [], []>} : vector<16x64xf32>, vector<64x64xf32>, vector<16x64xf32> -> vector<16x64xf32>
    %c0_33 = arith.constant 0 : index
    %c0_34 = arith.constant 0 : index
    %36 = vector.load %arg9[%c0_33, %c0_34] : memref<1x64xf32, #tpu.memory_space<vmem>>, vector<1x64xf32>
    %37 = vector.broadcast %36 : vector<1x64xf32> to vector<16x64xf32>
    %38 = arith.addf %35, %37 : vector<16x64xf32>
    %c0_35 = arith.constant 0 : index
    %c0_36 = arith.constant 0 : index
    %39 = vector.load %arg10[%c0_35, %c0_36] : memref<16x64xf32, #tpu.memory_space<vmem>>, vector<16x64xf32>
    tpu.vector_store %arg10[%c0_35, %c0_36], %38 {strides = array<i32>} : memref<16x64xf32, #tpu.memory_space<vmem>>, vector<16x64xf32>,
    return
  }
}

</mosaic_0001>

<llo_original>
// kernel: attention_forward.1
$region0: #{attention_forward.1}
  #allocation0 [shape = 'u32[]', space=smem, size = 0x4, offset = 0x4, fixed_abs, tag = 'smem constant byte address 0x4 - core index']
  #allocation1 [shape = 'u32[144,128]{1,0:T(1,128)}', space=vmem, size = 0x12000, scoped, tag = 'internal scratch']
  %s0 = inlined_call_operand.vmem [shape: f32[16,64], index: 0, kind: input, shape index: {}]
  %s1 = inlined_call_operand.vmem [shape: f32[64,192], index: 1, kind: input, shape index: {}]
  %s2 = inlined_call_operand.vmem [shape: f32[1,192], index: 2, kind: input, shape index: {}]
  %s3 = inlined_call_operand.vmem [shape: f32[64,16], index: 3, kind: input, shape index: {}]
  %s4 = inlined_call_operand.vmem [shape: f32[16,64], index: 4, kind: input, shape index: {}]
  %s5 = inlined_call_operand.vmem [shape: f32[128,16], index: 5, kind: input, shape index: {}]
  %s6 = inlined_call_operand.vmem [shape: f32[128,16], index: 6, kind: input, shape index: {}]
  %s7 = inlined_call_operand.vmem [shape: f32[16,128], index: 7, kind: input, shape index: {}]
  %s8 = inlined_call_operand.vmem [shape: f32[64,64], index: 8, kind: input, shape index: {}]
  %s9 = inlined_call_operand.vmem [shape: f32[1,64], index: 9, kind: input, shape index: {}]
  %s10 = inlined_call_operand.hbm [shape: f32[16,64], index: 10, kind: output, shape index: {}]
  %s11 = sld [smem:[#allocation0]]
  $region50: #{attention_forward.1} parent=0
    _
  %s13 = ssub.s32 1, %s11
  %s14 = scalar_select 0, %s13, %s11
  $region1: #{attention_forward.1} parent=0
    #allocation2 [shape = 'u8[8192]{0}', space=vmem, size = 0x2000, scoped, tag = 'output window, operand 0, single buffered']
    #allocation3 [shape = 's32[1]{0}', space=sflag, size = 0x4, scoped, tag = 'scoped memory for attention_forward.1']
    %15 = vsyncpa [#allocation3], 0
    // Predicated region
    $region2: #{attention_forward.1} parent=1 // pred_check
      _
    $region3: #{attention_forward.1} parent=1 // pred_check_branch
      %17 = sbr.rel (0) target = $region5
    $region4: #{attention_forward.1} parent=1 // pred_region
      _
    $region5: #{attention_forward.1} parent=1 // pred_fallthru
      _
    // Predicated region
    $region6: #{attention_forward.1} parent=1 // pred_check
      _
    $region7: #{attention_forward.1} parent=1 // pred_check_branch
      %19 = sbr.rel (0) target = $region9
    $region8: #{attention_forward.1} parent=1 // pred_region
      _
    $region9: #{attention_forward.1} parent=1 // pred_fallthru
      _
    // Predicated region
    $region10: #{attention_forward.1} parent=1 // pred_check
      _
    $region11: #{attention_forward.1} parent=1 // pred_check_branch
      %21 = sbr.rel (0) target = $region13
    $region12: #{attention_forward.1} parent=1 // pred_region
      _
    $region13: #{attention_forward.1} parent=1 // pred_fallthru
      _
    // Predicated region
    $region14: #{attention_forward.1} parent=1 // pred_check
      _
    $region15: #{attention_forward.1} parent=1 // pred_check_branch
      %23 = sbr.rel (0) target = $region17
    $region16: #{attention_forward.1} parent=1 // pred_region
      _
    $region17: #{attention_forward.1} parent=1 // pred_fallthru
      _
    // Predicated region
    $region18: #{attention_forward.1} parent=1 // pred_check
      _
    $region19: #{attention_forward.1} parent=1 // pred_check_branch
      %25 = sbr.rel (0) target = $region21
    $region20: #{attention_forward.1} parent=1 // pred_region
      _
    $region21: #{attention_forward.1} parent=1 // pred_fallthru
      _
    // Predicated region
    $region22: #{attention_forward.1} parent=1 // pred_check
      _
    $region23: #{attention_forward.1} parent=1 // pred_check_branch
      %27 = sbr.rel (0) target = $region25
    $region24: #{attention_forward.1} parent=1 // pred_region
      _
    $region25: #{attention_forward.1} parent=1 // pred_fallthru
      _
    // Predicated region
    $region26: #{attention_forward.1} parent=1 // pred_check
      _
    $region27: #{attention_forward.1} parent=1 // pred_check_branch
      %29 = sbr.rel (0) target = $region29
    $region28: #{attention_forward.1} parent=1 // pred_region
      _
    $region29: #{attention_forward.1} parent=1 // pred_fallthru
      _
    // Predicated region
    $region30: #{attention_forward.1} parent=1 // pred_check
      _
    $region31: #{attention_forward.1} parent=1 // pred_check_branch
      %31 = sbr.rel (0) target = $region33
    $region32: #{attention_forward.1} parent=1 // pred_region
      _
    $region33: #{attention_forward.1} parent=1 // pred_fallthru
      _
    // Predicated region
    $region34: #{attention_forward.1} parent=1 // pred_check
      _
    $region35: #{attention_forward.1} parent=1 // pred_check_branch
      %33 = sbr.rel (0) target = $region37
    $region36: #{attention_forward.1} parent=1 // pred_region
      _
    $region37: #{attention_forward.1} parent=1 // pred_fallthru
      _
    // Predicated region
    $region38: #{attention_forward.1} parent=1 // pred_check
      _
    $region39: #{attention_forward.1} parent=1 // pred_check_branch
      %35 = sbr.rel (0) target = $region41
    $region40: #{attention_forward.1} parent=1 // pred_region
      _
    $region41: #{attention_forward.1} parent=1 // pred_fallthru
      _
    %v36 = vld [vmem:[%s0] sm:$0xff]
    %v37 = vld [vmem:[%s0 + $0x8] sm:$0xff]
    %v38 = vld [vmem:[%s1] sm:$0xff]
    %v39 = vld [vmem:[%s1 + $0x8] sm:$0xff]
    %v40 = vld [vmem:[%s1 + $0x10] sm:$0xff]
    %v41 = vld [vmem:[%s1 + $0x18] sm:$0xff]
    %v42 = vld [vmem:[%s1 + $0x20] sm:$0xff]
    %v43 = vld [vmem:[%s1 + $0x28] sm:$0xff]
    %v44 = vld [vmem:[%s1 + $0x30] sm:$0xff]
    %v45 = vld [vmem:[%s1 + $0x38] sm:$0xff]
    %v46 = vld [vmem:[%s1 + $0x40] sm:$0xff]
    %v47 = vld [vmem:[%s1 + $0x48] sm:$0xff]
    %v48 = vld [vmem:[%s1 + $0x50] sm:$0xff]
    %v49 = vld [vmem:[%s1 + $0x58] sm:$0xff]
    %v50 = vld [vmem:[%s1 + $0x60] sm:$0xff]
    %v51 = vld [vmem:[%s1 + $0x68] sm:$0xff]
    %v52 = vld [vmem:[%s1 + $0x70] sm:$0xff]
    %v53 = vld [vmem:[%s1 + $0x78] sm:$0xff]
    %v54 = vld [vmem:[%s2] sm:$0x3]
    %v56 = vlaneseq
    %v57 = vshrl.u32 %v56, 7
    %v58 = vsub.s32 0, %v57
    %v59 = vrot.slane %v54, %v58
    %v60 = vlaneseq
    %v61 = vshrl.u32 %v60, 7
    %v62 = vsub.s32 1, %v61
    %v63 = vrot.slane %v54, %v62
    %vm66 = vcmask 523264
    %v68 = vsel %vm66, %v36, 0
    %v71 = vsel %vm66, %v37, 0
    %73 = vmatprep.subr.mxu0 %v39
    %74 = vmatpush1.msra.mxu0 %v38
    %75 = vmatprep.subr.mxu0 %v41
    %76 = vmatpush1.msra.mxu0 %v40
    %77 = vmatprep.subr.mxu0 %v43
    %78 = vmatpush1.msra.mxu0 %v42
    %79 = vmatprep.subr.mxu0 %v45
    %80 = vmatpush1.msra.mxu0 %v44
    %81 = vmatprep.subr.mxu0 %v47
    %82 = vmatpush1.msra.mxu0 %v46
    %83 = vmatprep.subr.mxu0 %v49
    %84 = vmatpush1.msra.mxu0 %v48
    %85 = vmatprep.subr.mxu0 %v51
    %86 = vmatpush1.msra.mxu0 %v50
    %87 = vmatprep.subr.mxu0 %v53
    %88 = vmatpush1.msra.mxu0 %v52
    %89 = vmatprep.subr.mxu0 0.0
    %90 = vmatpush1.msra.mxu0 0.0
    %91 = vmatprep.subr.mxu0 0.0
    %92 = vmatpush1.msra.mxu0 0.0
    %93 = vmatprep.subr.mxu0 0.0
    %94 = vmatpush1.msra.mxu0 0.0
    %95 = vmatprep.subr.mxu0 0.0
    %96 = vmatpush1.msra.mxu0 0.0
    %97 = vmatprep.subr.mxu0 0.0
    %98 = vmatpush1.msra.mxu0 0.0
    %99 = vmatprep.subr.mxu0 0.0
    %100 = vmatpush1.msra.mxu0 0.0
    %101 = vmatprep.subr.mxu0 0.0
    %102 = vmatpush1.msra.mxu0 0.0
    %103 = vmatprep.subr.mxu0 0.0
    %104 = vmatpush1.msra.mxu0 0.0
    %105 = vmatprep.subr.mxu0 0.0
    %106 = vmatpush1.msra.mxu0 0.0
    %107 = vmatprep.subr.mxu0 0.0
    %108 = vmatpush1.msra.mxu0 0.0
    %109 = vmatprep.subr.mxu0 0.0
    %110 = vmatpush1.msra.mxu0 0.0
    %111 = vmatprep.subr.mxu0 0.0
    %112 = vmatpush1.msra.mxu0 0.0
    %113 = vmatprep.subr.mxu0 0.0
    %114 = vmatpush1.msra.mxu0 0.0
    %115 = vmatprep.subr.mxu0 0.0
    %116 = vmatpush1.msra.mxu0 0.0
    %117 = vmatprep.subr.mxu0 0.0
    %118 = vmatpush1.msra.mxu0 0.0
    %119 = vmatprep.subr.mxu0 0.0
    %120 = vmatpush1.msra.mxu0 0.0
    %121 = vmatprep.subr.mxu0 0.0
    %122 = vmatpush1.msra.mxu0 0.0
    %123 = vmatprep.subr.mxu0 0.0
    %124 = vmatpush1.msra.mxu0 0.0
    %125 = vmatprep.subr.mxu0 0.0
    %126 = vmatpush1.msra.mxu0 0.0
    %127 = vmatprep.subr.mxu0 0.0
    %128 = vmatpush1.msra.mxu0 0.0
    %129 = vmatprep.subr.mxu0 0.0
    %130 = vmatpush1.msra.mxu0 0.0
    %131 = vmatprep.subr.mxu0 0.0
    %132 = vmatpush1.msra.mxu0 0.0
    %133 = vmatprep.subr.mxu0 0.0
    %134 = vmatpush1.msra.mxu0 0.0
    %135 = vmatprep.subr.mxu0 0.0
    %136 = vmatpush1.msra.mxu0 0.0
    %137 = vmatprep.mubr.f32.mxu0 0.0
    %138 = vmatmul.mubr.f32.gmra.mrb[0].mxu0 %v68
    %v139 = vpop.f32.mrb[0].mxu0
    %v140 = vadd.f32 %v59, %v139
    %v141 = vpop.f32.mrb[0].mxu0
    %v142 = vadd.f32 %v63, %v141
    %143 = vmatprep.mubr.f32.mxu0 0.0
    %144 = vmatmul.mubr.f32.gmra.mrb[0].mxu0 %v71
    %v145 = vpop.f32.mrb[0].mxu0
    %v146 = vadd.f32 %v59, %v145
    %v147 = vpop.f32.mrb[0].mxu0
    %v148 = vadd.f32 %v63, %v147
    %149 = vdwg.mxu0
    %v150 = vld [vmem:[%s5] sm:$0xff]
    %v151 = vld [vmem:[%s5 + $0x8] sm:$0xff]
    %v152 = vld [vmem:[%s5 + $0x10] sm:$0xff]
    %v153 = vld [vmem:[%s5 + $0x18] sm:$0xff]
    %v154 = vld [vmem:[%s5 + $0x20] sm:$0xff]
    %v155 = vld [vmem:[%s5 + $0x28] sm:$0xff]
    %v156 = vld [vmem:[%s5 + $0x30] sm:$0xff]
    %v157 = vld [vmem:[%s5 + $0x38] sm:$0xff]
    %v158 = vld [vmem:[%s5 + $0x40] sm:$0xff]
    %v159 = vld [vmem:[%s5 + $0x48] sm:$0xff]
    %v160 = vld [vmem:[%s5 + $0x50] sm:$0xff]
    %v161 = vld [vmem:[%s5 + $0x58] sm:$0xff]
    %v162 = vld [vmem:[%s5 + $0x60] sm:$0xff]
    %v163 = vld [vmem:[%s5 + $0x68] sm:$0xff]
    %v164 = vld [vmem:[%s5 + $0x70] sm:$0xff]
    %v165 = vld [vmem:[%s5 + $0x78] sm:$0xff]
    %v166 = vld [vmem:[%s6] sm:$0xff]
    %v167 = vld [vmem:[%s6 + $0x8] sm:$0xff]
    %v168 = vld [vmem:[%s6 + $0x10] sm:$0xff]
    %v169 = vld [vmem:[%s6 + $0x18] sm:$0xff]
    %v170 = vld [vmem:[%s6 + $0x20] sm:$0xff]
    %v171 = vld [vmem:[%s6 + $0x28] sm:$0xff]
    %v172 = vld [vmem:[%s6 + $0x30] sm:$0xff]
    %v173 = vld [vmem:[%s6 + $0x38] sm:$0xff]
    %v174 = vld [vmem:[%s6 + $0x40] sm:$0xff]
    %v175 = vld [vmem:[%s6 + $0x48] sm:$0xff]
    %v176 = vld [vmem:[%s6 + $0x50] sm:$0xff]
    %v177 = vld [vmem:[%s6 + $0x58] sm:$0xff]
    %v178 = vld [vmem:[%s6 + $0x60] sm:$0xff]
    %v179 = vld [vmem:[%s6 + $0x68] sm:$0xff]
    %v180 = vld [vmem:[%s6 + $0x70] sm:$0xff]
    %v181 = vld [vmem:[%s6 + $0x78] sm:$0xff]
    %vm182 = vcmask 130048
    %v184 = vsel %vm182, %v150, 0
    %v187 = vsel %vm182, %v151, 0
    %v190 = vsel %vm182, %v152, 0
    %v193 = vsel %vm182, %v153, 0
    %v196 = vsel %vm182, %v154, 0
    %v199 = vsel %vm182, %v155, 0
    %v202 = vsel %vm182, %v156, 0
    %v205 = vsel %vm182, %v157, 0
    %v208 = vsel %vm182, %v158, 0
    %v211 = vsel %vm182, %v159, 0
    %v214 = vsel %vm182, %v160, 0
    %v217 = vsel %vm182, %v161, 0
    %v220 = vsel %vm182, %v162, 0
    %v223 = vsel %vm182, %v163, 0
    %v226 = vsel %vm182, %v164, 0
    %v229 = vsel %vm182, %v165, 0
    %231 = vmatprep.subr.mxu0 0.0
    %232 = vmatpush1.msra.mxu0 %v140
    %233 = vmatprep.subr.mxu0 0.0
    %234 = vmatpush1.msra.mxu0 %v146
    %235 = vmatprep.subr.mxu0 0.0
    %236 = vmatpush1.msra.mxu0 0.0
    %237 = vmatprep.subr.mxu0 0.0
    %238 = vmatpush1.msra.mxu0 0.0
    %239 = vmatprep.subr.mxu0 0.0
    %240 = vmatpush1.msra.mxu0 0.0
    %241 = vmatprep.subr.mxu0 0.0
    %242 = vmatpush1.msra.mxu0 0.0
    %243 = vmatprep.subr.mxu0 0.0
    %244 = vmatpush1.msra.mxu0 0.0
    %245 = vmatprep.subr.mxu0 0.0
    %246 = vmatpush1.msra.mxu0 0.0
    %247 = vmatprep.subr.mxu0 0.0
    %248 = vmatpush1.msra.mxu0 0.0
    %249 = vmatprep.subr.mxu0 0.0
    %250 = vmatpush1.msra.mxu0 0.0
    %251 = vmatprep.subr.mxu0 0.0
    %252 = vmatpush1.msra.mxu0 0.0
    %253 = vmatprep.subr.mxu0 0.0
    %254 = vmatpush1.msra.mxu0 0.0
    %255 = vmatprep.subr.mxu0 0.0
    %256 = vmatpush1.msra.mxu0 0.0
    %257 = vmatprep.subr.mxu0 0.0
    %258 = vmatpush1.msra.mxu0 0.0
    %259 = vmatprep.subr.mxu0 0.0
    %260 = vmatpush1.msra.mxu0 0.0
    %261 = vmatprep.subr.mxu0 0.0
    %262 = vmatpush1.msra.mxu0 0.0
    %263 = vmatprep.subr.mxu0 0.0
    %264 = vmatpush1.msra.mxu0 0.0
    %265 = vmatprep.subr.mxu0 0.0
    %266 = vmatpush1.msra.mxu0 0.0
    %267 = vmatprep.subr.mxu0 0.0
    %268 = vmatpush1.msra.mxu0 0.0
    %269 = vmatprep.subr.mxu0 0.0
    %270 = vmatpush1.msra.mxu0 0.0
    %271 = vmatprep.subr.mxu0 0.0
    %272 = vmatpush1.msra.mxu0 0.0
    %273 = vmatprep.subr.mxu0 0.0
    %274 = vmatpush1.msra.mxu0 0.0
    %275 = vmatprep.subr.mxu0 0.0
    %276 = vmatpush1.msra.mxu0 0.0
    %277 = vmatprep.subr.mxu0 0.0
    %278 = vmatpush1.msra.mxu0 0.0
    %279 = vmatprep.subr.mxu0 0.0
    %280 = vmatpush1.msra.mxu0 0.0
    %281 = vmatprep.subr.mxu0 0.0
    %282 = vmatpush1.msra.mxu0 0.0
    %283 = vmatprep.subr.mxu0 0.0
    %284 = vmatpush1.msra.mxu0 0.0
    %285 = vmatprep.subr.mxu0 0.0
    %286 = vmatpush1.msra.mxu0 0.0
    %287 = vmatprep.subr.mxu0 0.0
    %288 = vmatpush1.msra.mxu0 0.0
    %289 = vmatprep.subr.mxu0 0.0
    %290 = vmatpush1.msra.mxu0 0.0
    %291 = vmatprep.subr.mxu0 0.0
    %292 = vmatpush1.msra.mxu0 0.0
    %293 = vmatprep.subr.mxu0 0.0
    %294 = vmatpush1.msra.mxu0 0.0
    %295 = vmatprep.mubr.f32.mxu0 0.0
    %296 = vmatmul.mubr.f32.gmra.mrb[0].mxu0 %v184
    %v297 = vpop.f32.mrb[0].mxu0
    %v298 = vadd.f32 0.0, %v297
    %v299 = vpop.f32.mrb[0].mxu0
    %300 = vmatprep.mubr.f32.mxu0 0.0
    %301 = vmatmul.mubr.f32.gmra.mrb[0].mxu0 %v187
    %v302 = vpop.f32.mrb[0].mxu0
    %v303 = vadd.f32 0.0, %v302
    %v304 = vpop.f32.mrb[0].mxu0
    %305 = vmatprep.mubr.f32.mxu0 0.0
    %306 = vmatmul.mubr.f32.gmra.mrb[0].mxu0 %v190
    %v307 = vpop.f32.mrb[0].mxu0
    %v308 = vadd.f32 0.0, %v307
    %v309 = vpop.f32.mrb[0].mxu0
    %310 = vmatprep.mubr.f32.mxu0 0.0
    %311 = vmatmul.mubr.f32.gmra.mrb[0].mxu0 %v193
    %v312 = vpop.f32.mrb[0].mxu0
    %v313 = vadd.f32 0.0, %v312
    %v314 = vpop.f32.mrb[0].mxu0
    %315 = vmatprep.mubr.f32.mxu0 0.0
    %316 = vmatmul.mubr.f32.gmra.mrb[0].mxu0 %v196
    %v317 = vpop.f32.mrb[0].mxu0
    %v318 = vadd.f32 0.0, %v317
    %v319 = vpop.f32.mrb[0].mxu0
    %320 = vmatprep.mubr.f32.mxu0 0.0
    %321 = vmatmul.mubr.f32.gmra.mrb[0].mxu0 %v199
    %v322 = vpop.f32.mrb[0].mxu0
    %v323 = vadd.f32 0.0, %v322
    %v324 = vpop.f32.mrb[0].mxu0
    %325 = vmatprep.mubr.f32.mxu0 0.0
    %326 = vmatmul.mubr.f32.gmra.mrb[0].mxu0 %v202
    %v327 = vpop.f32.mrb[0].mxu0
    %v328 = vadd.f32 0.0, %v327
    %v329 = vpop.f32.mrb[0].mxu0
    %330 = vmatprep.mubr.f32.mxu0 0.0
    %331 = vmatmul.mubr.f32.gmra.mrb[0].mxu0 %v205
    %v332 = vpop.f32.mrb[0].mxu0
    %v333 = vadd.f32 0.0, %v332
    %v334 = vpop.f32.mrb[0].mxu0
    %335 = vmatprep.mubr.f32.mxu0 0.0
    %336 = vmatmul.mubr.f32.gmra.mrb[0].mxu0 %v208
    %v337 = vpop.f32.mrb[0].mxu0
    %v338 = vadd.f32 0.0, %v337
    %v339 = vpop.f32.mrb[0].mxu0
    %340 = vmatprep.mubr.f32.mxu0 0.0
    %341 = vmatmul.mubr.f32.gmra.mrb[0].mxu0 %v211
    %v342 = vpop.f32.mrb[0].mxu0
    %v343 = vadd.f32 0.0, %v342
    %v344 = vpop.f32.mrb[0].mxu0
    %345 = vmatprep.mubr.f32.mxu0 0.0
    %346 = vmatmul.mubr.f32.gmra.mrb[0].mxu0 %v214
    %v347 = vpop.f32.mrb[0].mxu0
    %v348 = vadd.f32 0.0, %v347
    %v349 = vpop.f32.mrb[0].mxu0
    %350 = vmatprep.mubr.f32.mxu0 0.0
    %351 = vmatmul.mubr.f32.gmra.mrb[0].mxu0 %v217
    %v352 = vpop.f32.mrb[0].mxu0
    %v353 = vadd.f32 0.0, %v352
    %v354 = vpop.f32.mrb[0].mxu0
    %355 = vmatprep.mubr.f32.mxu0 0.0
    %356 = vmatmul.mubr.f32.gmra.mrb[0].mxu0 %v220
    %v357 = vpop.f32.mrb[0].mxu0
    %v358 = vadd.f32 0.0, %v357
    %v359 = vpop.f32.mrb[0].mxu0
    %360 = vmatprep.mubr.f32.mxu0 0.0
    %361 = vmatmul.mubr.f32.gmra.mrb[0].mxu0 %v223
    %v362 = vpop.f32.mrb[0].mxu0
    %v363 = vadd.f32 0.0, %v362
    %v364 = vpop.f32.mrb[0].mxu0
    %365 = vmatprep.mubr.f32.mxu0 0.0
    %366 = vmatmul.mubr.f32.gmra.mrb[0].mxu0 %v226
    %v367 = vpop.f32.mrb[0].mxu0
    %v368 = vadd.f32 0.0, %v367
    %v369 = vpop.f32.mrb[0].mxu0
    %370 = vmatprep.mubr.f32.mxu0 0.0
    %371 = vmatmul.mubr.f32.gmra.mrb[0].mxu0 %v229
    %v372 = vpop.f32.mrb[0].mxu0
    %v373 = vadd.f32 0.0, %v372
    %v374 = vpop.f32.mrb[0].mxu0
    %375 = vdwg.mxu0
    %378 = vrot.lane.b32.xlu0 %v140, 64
    %v379 = vpop.permute.xlu0 %378
    %380 = vrot.lane.b32.xlu0 %v146, 64
    %v381 = vpop.permute.xlu0 %380
    %v385 = vsel %vm182, %v166, 0
    %v388 = vsel %vm182, %v167, 0
    %v391 = vsel %vm182, %v168, 0
    %v394 = vsel %vm182, %v169, 0
    %v397 = vsel %vm182, %v170, 0
    %v400 = vsel %vm182, %v171, 0
    %v403 = vsel %vm182, %v172, 0
    %v406 = vsel %vm182, %v173, 0
    %v409 = vsel %vm182, %v174, 0
    %v412 = vsel %vm182, %v175, 0
    %v415 = vsel %vm182, %v176, 0
    %v418 = vsel %vm182, %v177, 0
    %v421 = vsel %vm182, %v178, 0
    %v424 = vsel %vm182, %v179, 0
    %v427 = vsel %vm182, %v180, 0
    %v430 = vsel %vm182, %v181, 0
    %432 = vmatprep.subr.mxu0 0.0
    %433 = vmatpush1.msra.mxu0 %v379
    %434 = vmatprep.subr.mxu0 0.0
    %435 = vmatpush1.msra.mxu0 %v381
    %436 = vmatprep.subr.mxu0 0.0
    %437 = vmatpush1.msra.mxu0 0.0
    %438 = vmatprep.subr.mxu0 0.0
    %439 = vmatpush1.msra.mxu0 0.0
    %440 = vmatprep.subr.mxu0 0.0
    %441 = vmatpush1.msra.mxu0 0.0
    %442 = vmatprep.subr.mxu0 0.0
    %443 = vmatpush1.msra.mxu0 0.0
    %444 = vmatprep.subr.mxu0 0.0
    %445 = vmatpush1.msra.mxu0 0.0
    %446 = vmatprep.subr.mxu0 0.0
    %447 = vmatpush1.msra.mxu0 0.0
    %448 = vmatprep.subr.mxu0 0.0
    %449 = vmatpush1.msra.mxu0 0.0
    %450 = vmatprep.subr.mxu0 0.0
    %451 = vmatpush1.msra.mxu0 0.0
    %452 = vmatprep.subr.mxu0 0.0
    %453 = vmatpush1.msra.mxu0 0.0
    %454 = vmatprep.subr.mxu0 0.0
    %455 = vmatpush1.msra.mxu0 0.0
    %456 = vmatprep.subr.mxu0 0.0
    %457 = vmatpush1.msra.mxu0 0.0
    %458 = vmatprep.subr.mxu0 0.0
    %459 = vmatpush1.msra.mxu0 0.0
    %460 = vmatprep.subr.mxu0 0.0
    %461 = vmatpush1.msra.mxu0 0.0
    %462 = vmatprep.subr.mxu0 0.0
    %463 = vmatpush1.msra.mxu0 0.0
    %464 = vmatprep.subr.mxu0 0.0
    %465 = vmatpush1.msra.mxu0 0.0
    %466 = vmatprep.subr.mxu0 0.0
    %467 = vmatpush1.msra.mxu0 0.0
    %468 = vmatprep.subr.mxu0 0.0
    %469 = vmatpush1.msra.mxu0 0.0
    %470 = vmatprep.subr.mxu0 0.0
    %471 = vmatpush1.msra.mxu0 0.0
    %472 = vmatprep.subr.mxu0 0.0
    %473 = vmatpush1.msra.mxu0 0.0
    %474 = vmatprep.subr.mxu0 0.0
    %475 = vmatpush1.msra.mxu0 0.0
    %476 = vmatprep.subr.mxu0 0.0
    %477 = vmatpush1.msra.mxu0 0.0
    %478 = vmatprep.subr.mxu0 0.0
    %479 = vmatpush1.msra.mxu0 0.0
    %480 = vmatprep.subr.mxu0 0.0
    %481 = vmatpush1.msra.mxu0 0.0
    %482 = vmatprep.subr.mxu0 0.0
    %483 = vmatpush1.msra.mxu0 0.0
    %484 = vmatprep.subr.mxu0 0.0
    %485 = vmatpush1.msra.mxu0 0.0
    %486 = vmatprep.subr.mxu0 0.0
    %487 = vmatpush1.msra.mxu0 0.0
    %488 = vmatprep.subr.mxu0 0.0
    %489 = vmatpush1.msra.mxu0 0.0
    %490 = vmatprep.subr.mxu0 0.0
    %491 = vmatpush1.msra.mxu0 0.0
    %492 = vmatprep.subr.mxu0 0.0
    %493 = vmatpush1.msra.mxu0 0.0
    %494 = vmatprep.subr.mxu0 0.0
    %495 = vmatpush1.msra.mxu0 0.0
    %496 = vmatprep.mubr.f32.mxu0 0.0
    %497 = vmatmul.mubr.f32.gmra.mrb[0].mxu0 %v385
    %v498 = vpop.f32.mrb[0].mxu0
    %v499 = vadd.f32 0.0, %v498
    %v500 = vpop.f32.mrb[0].mxu0
    %501 = vmatprep.mubr.f32.mxu0 0.0
    %502 = vmatmul.mubr.f32.gmra.mrb[0].mxu0 %v388
    %v503 = vpop.f32.mrb[0].mxu0
    %v504 = vadd.f32 0.0, %v503
    %v505 = vpop.f32.mrb[0].mxu0
    %506 = vmatprep.mubr.f32.mxu0 0.0
    %507 = vmatmul.mubr.f32.gmra.mrb[0].mxu0 %v391
    %v508 = vpop.f32.mrb[0].mxu0
    %v509 = vadd.f32 0.0, %v508
    %v510 = vpop.f32.mrb[0].mxu0
    %511 = vmatprep.mubr.f32.mxu0 0.0
    %512 = vmatmul.mubr.f32.gmra.mrb[0].mxu0 %v394
    %v513 = vpop.f32.mrb[0].mxu0
    %v514 = vadd.f32 0.0, %v513
    %v515 = vpop.f32.mrb[0].mxu0
    %516 = vmatprep.mubr.f32.mxu0 0.0
    %517 = vmatmul.mubr.f32.gmra.mrb[0].mxu0 %v397
    %v518 = vpop.f32.mrb[0].mxu0
    %v519 = vadd.f32 0.0, %v518
    %v520 = vpop.f32.mrb[0].mxu0
    %521 = vmatprep.mubr.f32.mxu0 0.0
    %522 = vmatmul.mubr.f32.gmra.mrb[0].mxu0 %v400
    %v523 = vpop.f32.mrb[0].mxu0
    %v524 = vadd.f32 0.0, %v523
    %v525 = vpop.f32.mrb[0].mxu0
    %526 = vmatprep.mubr.f32.mxu0 0.0
    %527 = vmatmul.mubr.f32.gmra.mrb[0].mxu0 %v403
    %v528 = vpop.f32.mrb[0].mxu0
    %v529 = vadd.f32 0.0, %v528
    %v530 = vpop.f32.mrb[0].mxu0
    %531 = vmatprep.mubr.f32.mxu0 0.0
    %532 = vmatmul.mubr.f32.gmra.mrb[0].mxu0 %v406
    %v533 = vpop.f32.mrb[0].mxu0
    %v534 = vadd.f32 0.0, %v533
    %v535 = vpop.f32.mrb[0].mxu0
    %536 = vmatprep.mubr.f32.mxu0 0.0
    %537 = vmatmul.mubr.f32.gmra.mrb[0].mxu0 %v409
    %v538 = vpop.f32.mrb[0].mxu0
    %v539 = vadd.f32 0.0, %v538
    %v540 = vpop.f32.mrb[0].mxu0
    %541 = vmatprep.mubr.f32.mxu0 0.0
    %542 = vmatmul.mubr.f32.gmra.mrb[0].mxu0 %v412
    %v543 = vpop.f32.mrb[0].mxu0
    %v544 = vadd.f32 0.0, %v543
    %v545 = vpop.f32.mrb[0].mxu0
    %546 = vmatprep.mubr.f32.mxu0 0.0
    %547 = vmatmul.mubr.f32.gmra.mrb[0].mxu0 %v415
    %v548 = vpop.f32.mrb[0].mxu0
    %v549 = vadd.f32 0.0, %v548
    %v550 = vpop.f32.mrb[0].mxu0
    %551 = vmatprep.mubr.f32.mxu0 0.0
    %552 = vmatmul.mubr.f32.gmra.mrb[0].mxu0 %v418
    %v553 = vpop.f32.mrb[0].mxu0
    %v554 = vadd.f32 0.0, %v553
    %v555 = vpop.f32.mrb[0].mxu0
    %556 = vmatprep.mubr.f32.mxu0 0.0
    %557 = vmatmul.mubr.f32.gmra.mrb[0].mxu0 %v421
    %v558 = vpop.f32.mrb[0].mxu0
    %v559 = vadd.f32 0.0, %v558
    %v560 = vpop.f32.mrb[0].mxu0
    %561 = vmatprep.mubr.f32.mxu0 0.0
    %562 = vmatmul.mubr.f32.gmra.mrb[0].mxu0 %v424
    %v563 = vpop.f32.mrb[0].mxu0
    %v564 = vadd.f32 0.0, %v563
    %v565 = vpop.f32.mrb[0].mxu0
    %566 = vmatprep.mubr.f32.mxu0 0.0
    %567 = vmatmul.mubr.f32.gmra.mrb[0].mxu0 %v427
    %v568 = vpop.f32.mrb[0].mxu0
    %v569 = vadd.f32 0.0, %v568
    %v570 = vpop.f32.mrb[0].mxu0
    %571 = vmatprep.mubr.f32.mxu0 0.0
    %572 = vmatmul.mubr.f32.gmra.mrb[0].mxu0 %v430
    %v573 = vpop.f32.mrb[0].mxu0
    %v574 = vadd.f32 0.0, %v573
    %v575 = vpop.f32.mrb[0].mxu0
    %576 = vdwg.mxu0
    %577 = vmatprep.subr.mxu0 0.0
    %578 = vmatpush1.msra.mxu0 %v142
    %579 = vmatprep.subr.mxu0 0.0
    %580 = vmatpush1.msra.mxu0 %v148
    %581 = vmatprep.subr.mxu0 0.0
    %582 = vmatpush1.msra.mxu0 0.0
    %583 = vmatprep.subr.mxu0 0.0
    %584 = vmatpush1.msra.mxu0 0.0
    %585 = vmatprep.subr.mxu0 0.0
    %586 = vmatpush1.msra.mxu0 0.0
    %587 = vmatprep.subr.mxu0 0.0
    %588 = vmatpush1.msra.mxu0 0.0
    %589 = vmatprep.subr.mxu0 0.0
    %590 = vmatpush1.msra.mxu0 0.0
    %591 = vmatprep.subr.mxu0 0.0
    %592 = vmatpush1.msra.mxu0 0.0
    %593 = vmatprep.subr.mxu0 0.0
    %594 = vmatpush1.msra.mxu0 0.0
    %595 = vmatprep.subr.mxu0 0.0
    %596 = vmatpush1.msra.mxu0 0.0
    %597 = vmatprep.subr.mxu0 0.0
    %598 = vmatpush1.msra.mxu0 0.0
    %599 = vmatprep.subr.mxu0 0.0
    %600 = vmatpush1.msra.mxu0 0.0
    %601 = vmatprep.subr.mxu0 0.0
    %602 = vmatpush1.msra.mxu0 0.0
    %603 = vmatprep.subr.mxu0 0.0
    %604 = vmatpush1.msra.mxu0 0.0
    %605 = vmatprep.subr.mxu0 0.0
    %606 = vmatpush1.msra.mxu0 0.0
    %607 = vmatprep.subr.mxu0 0.0
    %608 = vmatpush1.msra.mxu0 0.0
    %609 = vmatprep.subr.mxu0 0.0
    %610 = vmatpush1.msra.mxu0 0.0
    %611 = vmatprep.subr.mxu0 0.0
    %612 = vmatpush1.msra.mxu0 0.0
    %613 = vmatprep.subr.mxu0 0.0
    %614 = vmatpush1.msra.mxu0 0.0
    %615 = vmatprep.subr.mxu0 0.0
    %616 = vmatpush1.msra.mxu0 0.0
    %617 = vmatprep.subr.mxu0 0.0
    %618 = vmatpush1.msra.mxu0 0.0
    %619 = vmatprep.subr.mxu0 0.0
    %620 = vmatpush1.msra.mxu0 0.0
    %621 = vmatprep.subr.mxu0 0.0
    %622 = vmatpush1.msra.mxu0 0.0
    %623 = vmatprep.subr.mxu0 0.0
    %624 = vmatpush1.msra.mxu0 0.0
    %625 = vmatprep.subr.mxu0 0.0
    %626 = vmatpush1.msra.mxu0 0.0
    %627 = vmatprep.subr.mxu0 0.0
    %628 = vmatpush1.msra.mxu0 0.0
    %629 = vmatprep.subr.mxu0 0.0
    %630 = vmatpush1.msra.mxu0 0.0
    %631 = vmatprep.subr.mxu0 0.0
    %632 = vmatpush1.msra.mxu0 0.0
    %633 = vmatprep.subr.mxu0 0.0
    %634 = vmatpush1.msra.mxu0 0.0
    %635 = vmatprep.subr.mxu0 0.0
    %636 = vmatpush1.msra.mxu0 0.0
    %637 = vmatprep.subr.mxu0 0.0
    %638 = vmatpush1.msra.mxu0 0.0
    %639 = vmatprep.subr.mxu0 0.0
    %640 = vmatpush1.msra.mxu0 0.0
    %641 = vmatprep.mubr.f32.mxu0 0.0
    %642 = vmatmul.mubr.f32.gmra.mrb[0].mxu0 %v385
    %v643 = vpop.f32.mrb[0].mxu0
    %v644 = vadd.f32 0.0, %v643
    %v645 = vpop.f32.mrb[0].mxu0
    %646 = vmatprep.mubr.f32.mxu0 0.0
    %647 = vmatmul.mubr.f32.gmra.mrb[0].mxu0 %v388
    %v648 = vpop.f32.mrb[0].mxu0
    %v649 = vadd.f32 0.0, %v648
    %v650 = vpop.f32.mrb[0].mxu0
    %651 = vmatprep.mubr.f32.mxu0 0.0
    %652 = vmatmul.mubr.f32.gmra.mrb[0].mxu0 %v391
    %v653 = vpop.f32.mrb[0].mxu0
    %v654 = vadd.f32 0.0, %v653
    %v655 = vpop.f32.mrb[0].mxu0
    %656 = vmatprep.mubr.f32.mxu0 0.0
    %657 = vmatmul.mubr.f32.gmra.mrb[0].mxu0 %v394
    %v658 = vpop.f32.mrb[0].mxu0
    %v659 = vadd.f32 0.0, %v658
    %v660 = vpop.f32.mrb[0].mxu0
    %661 = vmatprep.mubr.f32.mxu0 0.0
    %662 = vmatmul.mubr.f32.gmra.mrb[0].mxu0 %v397
    %v663 = vpop.f32.mrb[0].mxu0
    %v664 = vadd.f32 0.0, %v663
    %v665 = vpop.f32.mrb[0].mxu0
    %666 = vmatprep.mubr.f32.mxu0 0.0
    %667 = vmatmul.mubr.f32.gmra.mrb[0].mxu0 %v400
    %v668 = vpop.f32.mrb[0].mxu0
    %v669 = vadd.f32 0.0, %v668
    %v670 = vpop.f32.mrb[0].mxu0
    %671 = vmatprep.mubr.f32.mxu0 0.0
    %672 = vmatmul.mubr.f32.gmra.mrb[0].mxu0 %v403
    %v673 = vpop.f32.mrb[0].mxu0
    %v674 = vadd.f32 0.0, %v673
    %v675 = vpop.f32.mrb[0].mxu0
    %676 = vmatprep.mubr.f32.mxu0 0.0
    %677 = vmatmul.mubr.f32.gmra.mrb[0].mxu0 %v406
    %v678 = vpop.f32.mrb[0].mxu0
    %v679 = vadd.f32 0.0, %v678
    %v680 = vpop.f32.mrb[0].mxu0
    %681 = vmatprep.mubr.f32.mxu0 0.0
    %682 = vmatmul.mubr.f32.gmra.mrb[0].mxu0 %v409
    %v683 = vpop.f32.mrb[0].mxu0
    %v684 = vadd.f32 0.0, %v683
    %v685 = vpop.f32.mrb[0].mxu0
    %686 = vmatprep.mubr.f32.mxu0 0.0
    %687 = vmatmul.mubr.f32.gmra.mrb[0].mxu0 %v412
    %v688 = vpop.f32.mrb[0].mxu0
    %v689 = vadd.f32 0.0, %v688
    %v690 = vpop.f32.mrb[0].mxu0
    %691 = vmatprep.mubr.f32.mxu0 0.0
    %692 = vmatmul.mubr.f32.gmra.mrb[0].mxu0 %v415
    %v693 = vpop.f32.mrb[0].mxu0
    %v694 = vadd.f32 0.0, %v693
    %v695 = vpop.f32.mrb[0].mxu0
    %696 = vmatprep.mubr.f32.mxu0 0.0
    %697 = vmatmul.mubr.f32.gmra.mrb[0].mxu0 %v418
    %v698 = vpop.f32.mrb[0].mxu0
    %v699 = vadd.f32 0.0, %v698
    %v700 = vpop.f32.mrb[0].mxu0
    %701 = vmatprep.mubr.f32.mxu0 0.0
    %702 = vmatmul.mubr.f32.gmra.mrb[0].mxu0 %v421
    %v703 = vpop.f32.mrb[0].mxu0
    %v704 = vadd.f32 0.0, %v703
    %v705 = vpop.f32.mrb[0].mxu0
    %706 = vmatprep.mubr.f32.mxu0 0.0
    %707 = vmatmul.mubr.f32.gmra.mrb[0].mxu0 %v424
    %v708 = vpop.f32.mrb[0].mxu0
    %v709 = vadd.f32 0.0, %v708
    %v710 = vpop.f32.mrb[0].mxu0
    %711 = vmatprep.mubr.f32.mxu0 0.0
    %712 = vmatmul.mubr.f32.gmra.mrb[0].mxu0 %v427
    %v713 = vpop.f32.mrb[0].mxu0
    %v714 = vadd.f32 0.0, %v713
    %v715 = vpop.f32.mrb[0].mxu0
    %716 = vmatprep.mubr.f32.mxu0 0.0
    %717 = vmatmul.mubr.f32.gmra.mrb[0].mxu0 %v430
    %v718 = vpop.f32.mrb[0].mxu0
    %v719 = vadd.f32 0.0, %v718
    %v720 = vpop.f32.mrb[0].mxu0
    %721 = vdwg.mxu0
    %v722 = vmul.f32 %v298, %v499
    %v723 = vmul.f32 %v303, %v504
    %v724 = vmul.f32 %v308, %v509
    %v725 = vmul.f32 %v313, %v514
    %v726 = vmul.f32 %v318, %v519
    %v727 = vmul.f32 %v323, %v524
    %v728 = vmul.f32 %v328, %v529
    %v729 = vmul.f32 %v333, %v534
    %v730 = vmul.f32 %v338, %v539
    %v731 = vmul.f32 %v343, %v544
    %v732 = vmul.f32 %v348, %v549
    %v733 = vmul.f32 %v353, %v554
    %v734 = vmul.f32 %v358, %v559
    %v735 = vmul.f32 %v363, %v564
    %v736 = vmul.f32 %v368, %v569
    %v737 = vmul.f32 %v373, %v574
    %v738 = vld [vmem:[%s3] sm:$0xff]
    %v739 = vld [vmem:[%s3 + $0x8] sm:$0xff]
    %v740 = vld [vmem:[%s3 + $0x10] sm:$0xff]
    %v741 = vld [vmem:[%s3 + $0x18] sm:$0xff]
    %v742 = vld [vmem:[%s3 + $0x20] sm:$0xff]
    %v743 = vld [vmem:[%s3 + $0x28] sm:$0xff]
    %v744 = vld [vmem:[%s3 + $0x30] sm:$0xff]
    %v745 = vld [vmem:[%s3 + $0x38] sm:$0xff]
    %v747 = vsel %vm66, %v722, 0
    %v750 = vsel %vm66, %v723, 0
    %v753 = vsel %vm66, %v724, 0
    %v756 = vsel %vm66, %v725, 0
    %v759 = vsel %vm66, %v726, 0
    %v762 = vsel %vm66, %v727, 0
    %v765 = vsel %vm66, %v728, 0
    %v768 = vsel %vm66, %v729, 0
    %v771 = vsel %vm66, %v730, 0
    %v774 = vsel %vm66, %v731, 0
    %v777 = vsel %vm66, %v732, 0
    %v780 = vsel %vm66, %v733, 0
    %v783 = vsel %vm66, %v734, 0
    %v786 = vsel %vm66, %v735, 0
    %v789 = vsel %vm66, %v736, 0
    %v792 = vsel %vm66, %v737, 0
    %794 = vmatprep.subr.mxu0 0.0
    %795 = vmatpush1.msra.mxu0 %v738
    %796 = vmatprep.subr.mxu0 0.0
    %797 = vmatpush1.msra.mxu0 %v739
    %798 = vmatprep.subr.mxu0 0.0
    %799 = vmatpush1.msra.mxu0 %v740
    %800 = vmatprep.subr.mxu0 0.0
    %801 = vmatpush1.msra.mxu0 %v741
    %802 = vmatprep.subr.mxu0 0.0
    %803 = vmatpush1.msra.mxu0 %v742
    %804 = vmatprep.subr.mxu0 0.0
    %805 = vmatpush1.msra.mxu0 %v743
    %806 = vmatprep.subr.mxu0 0.0
    %807 = vmatpush1.msra.mxu0 %v744
    %808 = vmatprep.subr.mxu0 0.0
    %809 = vmatpush1.msra.mxu0 %v745
    %810 = vmatprep.subr.mxu0 0.0
    %811 = vmatpush1.msra.mxu0 0.0
    %812 = vmatprep.subr.mxu0 0.0
    %813 = vmatpush1.msra.mxu0 0.0
    %814 = vmatprep.subr.mxu0 0.0
    %815 = vmatpush1.msra.mxu0 0.0
    %816 = vmatprep.subr.mxu0 0.0
    %817 = vmatpush1.msra.mxu0 0.0
    %818 = vmatprep.subr.mxu0 0.0
    %819 = vmatpush1.msra.mxu0 0.0
    %820 = vmatprep.subr.mxu0 0.0
    %821 = vmatpush1.msra.mxu0 0.0
    %822 = vmatprep.subr.mxu0 0.0
    %823 = vmatpush1.msra.mxu0 0.0
    %824 = vmatprep.subr.mxu0 0.0
    %825 = vmatpush1.msra.mxu0 0.0
    %826 = vmatprep.subr.mxu0 0.0
    %827 = vmatpush1.msra.mxu0 0.0
    %828 = vmatprep.subr.mxu0 0.0
    %829 = vmatpush1.msra.mxu0 0.0
    %830 = vmatprep.subr.mxu0 0.0
    %831 = vmatpush1.msra.mxu0 0.0
    %832 = vmatprep.subr.mxu0 0.0
    %833 = vmatpush1.msra.mxu0 0.0
    %834 = vmatprep.subr.mxu0 0.0
    %835 = vmatpush1.msra.mxu0 0.0
    %836 = vmatprep.subr.mxu0 0.0
    %837 = vmatpush1.msra.mxu0 0.0
    %838 = vmatprep.subr.mxu0 0.0
    %839 = vmatpush1.msra.mxu0 0.0
    %840 = vmatprep.subr.mxu0 0.0
    %841 = vmatpush1.msra.mxu0 0.0
    %842 = vmatprep.subr.mxu0 0.0
    %843 = vmatpush1.msra.mxu0 0.0
    %844 = vmatprep.subr.mxu0 0.0
    %845 = vmatpush1.msra.mxu0 0.0
    %846 = vmatprep.subr.mxu0 0.0
    %847 = vmatpush1.msra.mxu0 0.0
    %848 = vmatprep.subr.mxu0 0.0
    %849 = vmatpush1.msra.mxu0 0.0
    %850 = vmatprep.subr.mxu0 0.0
    %851 = vmatpush1.msra.mxu0 0.0
    %852 = vmatprep.subr.mxu0 0.0
    %853 = vmatpush1.msra.mxu0 0.0
    %854 = vmatprep.subr.mxu0 0.0
    %855 = vmatpush1.msra.mxu0 0.0
    %856 = vmatprep.subr.mxu0 0.0
    %857 = vmatpush1.msra.mxu0 0.0
    %858 = vmatprep.mubr.f32.mxu0 0.0
    %859 = vmatmul.mubr.f32.gmra.mrb[0].mxu0 %v747
    %v860 = vpop.f32.mrb[0].mxu0
    %v861 = vadd.f32 0.0, %v860
    %v862 = vpop.f32.mrb[0].mxu0
    %863 = vmatprep.mubr.f32.mxu0 0.0
    %864 = vmatmul.mubr.f32.gmra.mrb[0].mxu0 %v750
    %v865 = vpop.f32.mrb[0].mxu0
    %v866 = vadd.f32 0.0, %v865
    %v867 = vpop.f32.mrb[0].mxu0
    %868 = vmatprep.mubr.f32.mxu0 0.0
    %869 = vmatmul.mubr.f32.gmra.mrb[0].mxu0 %v753
    %v870 = vpop.f32.mrb[0].mxu0
    %v871 = vadd.f32 0.0, %v870
    %v872 = vpop.f32.mrb[0].mxu0
    %873 = vmatprep.mubr.f32.mxu0 0.0
    %874 = vmatmul.mubr.f32.gmra.mrb[0].mxu0 %v756
    %v875 = vpop.f32.mrb[0].mxu0
    %v876 = vadd.f32 0.0, %v875
    %v877 = vpop.f32.mrb[0].mxu0
    %878 = vmatprep.mubr.f32.mxu0 0.0
    %879 = vmatmul.mubr.f32.gmra.mrb[0].mxu0 %v759
    %v880 = vpop.f32.mrb[0].mxu0
    %v881 = vadd.f32 0.0, %v880
    %v882 = vpop.f32.mrb[0].mxu0
    %883 = vmatprep.mubr.f32.mxu0 0.0
    %884 = vmatmul.mubr.f32.gmra.mrb[0].mxu0 %v762
    %v885 = vpop.f32.mrb[0].mxu0
    %v886 = vadd.f32 0.0, %v885
    %v887 = vpop.f32.mrb[0].mxu0
    %888 = vmatprep.mubr.f32.mxu0 0.0
    %889 = vmatmul.mubr.f32.gmra.mrb[0].mxu0 %v765
    %v890 = vpop.f32.mrb[0].mxu0
    %v891 = vadd.f32 0.0, %v890
    %v892 = vpop.f32.mrb[0].mxu0
    %893 = vmatprep.mubr.f32.mxu0 0.0
    %894 = vmatmul.mubr.f32.gmra.mrb[0].mxu0 %v768
    %v895 = vpop.f32.mrb[0].mxu0
    %v896 = vadd.f32 0.0, %v895
    %v897 = vpop.f32.mrb[0].mxu0
    %898 = vmatprep.mubr.f32.mxu0 0.0
    %899 = vmatmul.mubr.f32.gmra.mrb[0].mxu0 %v771
    %v900 = vpop.f32.mrb[0].mxu0
    %v901 = vadd.f32 0.0, %v900
    %v902 = vpop.f32.mrb[0].mxu0
    %903 = vmatprep.mubr.f32.mxu0 0.0
    %904 = vmatmul.mubr.f32.gmra.mrb[0].mxu0 %v774
    %v905 = vpop.f32.mrb[0].mxu0
    %v906 = vadd.f32 0.0, %v905
    %v907 = vpop.f32.mrb[0].mxu0
    %908 = vmatprep.mubr.f32.mxu0 0.0
    %909 = vmatmul.mubr.f32.gmra.mrb[0].mxu0 %v777
    %v910 = vpop.f32.mrb[0].mxu0
    %v911 = vadd.f32 0.0, %v910
    %v912 = vpop.f32.mrb[0].mxu0
    %913 = vmatprep.mubr.f32.mxu0 0.0
    %914 = vmatmul.mubr.f32.gmra.mrb[0].mxu0 %v780
    %v915 = vpop.f32.mrb[0].mxu0
    %v916 = vadd.f32 0.0, %v915
    %v917 = vpop.f32.mrb[0].mxu0
    %918 = vmatprep.mubr.f32.mxu0 0.0
    %919 = vmatmul.mubr.f32.gmra.mrb[0].mxu0 %v783
    %v920 = vpop.f32.mrb[0].mxu0
    %v921 = vadd.f32 0.0, %v920
    %v922 = vpop.f32.mrb[0].mxu0
    %923 = vmatprep.mubr.f32.mxu0 0.0
    %924 = vmatmul.mubr.f32.gmra.mrb[0].mxu0 %v786
    %v925 = vpop.f32.mrb[0].mxu0
    %v926 = vadd.f32 0.0, %v925
    %v927 = vpop.f32.mrb[0].mxu0
    %928 = vmatprep.mubr.f32.mxu0 0.0
    %929 = vmatmul.mubr.f32.gmra.mrb[0].mxu0 %v789
    %v930 = vpop.f32.mrb[0].mxu0
    %v931 = vadd.f32 0.0, %v930
    %v932 = vpop.f32.mrb[0].mxu0
    %933 = vmatprep.mubr.f32.mxu0 0.0
    %934 = vmatmul.mubr.f32.gmra.mrb[0].mxu0 %v792
    %v935 = vpop.f32.mrb[0].mxu0
    %v936 = vadd.f32 0.0, %v935
    %v937 = vpop.f32.mrb[0].mxu0
    %938 = vdwg.mxu0
    %v939 = vmul.f32 %v861, 0.125
    %v940 = vmul.f32 %v866, 0.125
    %v941 = vmul.f32 %v871, 0.125
    %v942 = vmul.f32 %v876, 0.125
    %v943 = vmul.f32 %v881, 0.125
    %v944 = vmul.f32 %v886, 0.125
    %v945 = vmul.f32 %v891, 0.125
    %v946 = vmul.f32 %v896, 0.125
    %v947 = vmul.f32 %v901, 0.125
    %v948 = vmul.f32 %v906, 0.125
    %v949 = vmul.f32 %v911, 0.125
    %v950 = vmul.f32 %v916, 0.125
    %v951 = vmul.f32 %v921, 0.125
    %v952 = vmul.f32 %v926, 0.125
    %v953 = vmul.f32 %v931, 0.125
    %v954 = vmul.f32 %v936, 0.125
    %v955 = vsel %vm182, %v939, -inf
    %v956 = vrot.slane %v955, 4
    %v957 = vmax.f32 %v955, %v956
    %v958 = vrot.slane %v957, 2
    %v959 = vmax.f32 %v957, %v958
    %v960 = vrot.slane %v959, 1
    %v961 = vmax.f32 %v959, %v960
    %v962 = vsel %vm182, %v940, -inf
    %v963 = vrot.slane %v962, 4
    %v964 = vmax.f32 %v962, %v963
    %v965 = vrot.slane %v964, 2
    %v966 = vmax.f32 %v964, %v965
    %v967 = vrot.slane %v966, 1
    %v968 = vmax.f32 %v966, %v967
    %v969 = vsel %vm182, %v941, -inf
    %v970 = vrot.slane %v969, 4
    %v971 = vmax.f32 %v969, %v970
    %v972 = vrot.slane %v971, 2
    %v973 = vmax.f32 %v971, %v972
    %v974 = vrot.slane %v973, 1
    %v975 = vmax.f32 %v973, %v974
    %v976 = vsel %vm182, %v942, -inf
    %v977 = vrot.slane %v976, 4
    %v978 = vmax.f32 %v976, %v977
    %v979 = vrot.slane %v978, 2
    %v980 = vmax.f32 %v978, %v979
    %v981 = vrot.slane %v980, 1
    %v982 = vmax.f32 %v980, %v981
    %v983 = vsel %vm182, %v943, -inf
    %v984 = vrot.slane %v983, 4
    %v985 = vmax.f32 %v983, %v984
    %v986 = vrot.slane %v985, 2
    %v987 = vmax.f32 %v985, %v986
    %v988 = vrot.slane %v987, 1
    %v989 = vmax.f32 %v987, %v988
    %v990 = vsel %vm182, %v944, -inf
    %v991 = vrot.slane %v990, 4
    %v992 = vmax.f32 %v990, %v991
    %v993 = vrot.slane %v992, 2
    %v994 = vmax.f32 %v992, %v993
    %v995 = vrot.slane %v994, 1
    %v996 = vmax.f32 %v994, %v995
    %v997 = vsel %vm182, %v945, -inf
    %v998 = vrot.slane %v997, 4
    %v999 = vmax.f32 %v997, %v998
    %v1000 = vrot.slane %v999, 2
    %v1001 = vmax.f32 %v999, %v1000
    %v1002 = vrot.slane %v1001, 1
    %v1003 = vmax.f32 %v1001, %v1002
    %v1004 = vsel %vm182, %v946, -inf
    %v1005 = vrot.slane %v1004, 4
    %v1006 = vmax.f32 %v1004, %v1005
    %v1007 = vrot.slane %v1006, 2
    %v1008 = vmax.f32 %v1006, %v1007
    %v1009 = vrot.slane %v1008, 1
    %v1010 = vmax.f32 %v1008, %v1009
    %v1011 = vsel %vm182, %v947, -inf
    %v1012 = vrot.slane %v1011, 4
    %v1013 = vmax.f32 %v1011, %v1012
    %v1014 = vrot.slane %v1013, 2
    %v1015 = vmax.f32 %v1013, %v1014
    %v1016 = vrot.slane %v1015, 1
    %v1017 = vmax.f32 %v1015, %v1016
    %v1018 = vsel %vm182, %v948, -inf
    %v1019 = vrot.slane %v1018, 4
    %v1020 = vmax.f32 %v1018, %v1019
    %v1021 = vrot.slane %v1020, 2
    %v1022 = vmax.f32 %v1020, %v1021
    %v1023 = vrot.slane %v1022, 1
    %v1024 = vmax.f32 %v1022, %v1023
    %v1025 = vsel %vm182, %v949, -inf
    %v1026 = vrot.slane %v1025, 4
    %v1027 = vmax.f32 %v1025, %v1026
    %v1028 = vrot.slane %v1027, 2
    %v1029 = vmax.f32 %v1027, %v1028
    %v1030 = vrot.slane %v1029, 1
    %v1031 = vmax.f32 %v1029, %v1030
    %v1032 = vsel %vm182, %v950, -inf
    %v1033 = vrot.slane %v1032, 4
    %v1034 = vmax.f32 %v1032, %v1033
    %v1035 = vrot.slane %v1034, 2
    %v1036 = vmax.f32 %v1034, %v1035
    %v1037 = vrot.slane %v1036, 1
    %v1038 = vmax.f32 %v1036, %v1037
    %v1039 = vsel %vm182, %v951, -inf
    %v1040 = vrot.slane %v1039, 4
    %v1041 = vmax.f32 %v1039, %v1040
    %v1042 = vrot.slane %v1041, 2
    %v1043 = vmax.f32 %v1041, %v1042
    %v1044 = vrot.slane %v1043, 1
    %v1045 = vmax.f32 %v1043, %v1044
    %v1046 = vsel %vm182, %v952, -inf
    %v1047 = vrot.slane %v1046, 4
    %v1048 = vmax.f32 %v1046, %v1047
    %v1049 = vrot.slane %v1048, 2
    %v1050 = vmax.f32 %v1048, %v1049
    %v1051 = vrot.slane %v1050, 1
    %v1052 = vmax.f32 %v1050, %v1051
    %v1053 = vsel %vm182, %v953, -inf
    %v1054 = vrot.slane %v1053, 4
    %v1055 = vmax.f32 %v1053, %v1054
    %v1056 = vrot.slane %v1055, 2
    %v1057 = vmax.f32 %v1055, %v1056
    %v1058 = vrot.slane %v1057, 1
    %v1059 = vmax.f32 %v1057, %v1058
    %v1060 = vsel %vm182, %v954, -inf
    %v1061 = vrot.slane %v1060, 4
    %v1062 = vmax.f32 %v1060, %v1061
    %v1063 = vrot.slane %v1062, 2
    %v1064 = vmax.f32 %v1062, %v1063
    %v1065 = vrot.slane %v1064, 1
    %v1066 = vmax.f32 %v1064, %v1065
    %vm1083 = vcmask 1041409
    %v1084 = vsel %vm1083, %v968, %v961
    %vm1085 = vcmask 1042434
    %v1086 = vsel %vm1085, %v975, %v1084
    %vm1087 = vcmask 1043459
    %v1088 = vsel %vm1087, %v982, %v1086
    %vm1089 = vcmask 1044484
    %v1090 = vsel %vm1089, %v989, %v1088
    %vm1091 = vcmask 1045509
    %v1092 = vsel %vm1091, %v996, %v1090
    %vm1093 = vcmask 1046534
    %v1094 = vsel %vm1093, %v1003, %v1092
    %vm1095 = vcmask 1047559
    %v1096 = vsel %vm1095, %v1010, %v1094
    %v1097 = vsel %vm1083, %v1024, %v1017
    %v1098 = vsel %vm1085, %v1031, %v1097
    %v1099 = vsel %vm1087, %v1038, %v1098
    %v1100 = vsel %vm1089, %v1045, %v1099
    %v1101 = vsel %vm1091, %v1052, %v1100
    %v1102 = vsel %vm1093, %v1059, %v1101
    %v1103 = vsel %vm1095, %v1066, %v1102
    %1106 = vmatprep.subr.mxu0 0.0
    %1107 = vmatpush1.msra.mxu0 %v1096
    %1108 = vmatprep.subr.mxu0 0.0
    %1109 = vmatpush1.msra.mxu0 %v1103
    %1110 = vmatprep.subr.mxu0 0.0
    %1111 = vmatpush1.msra.mxu0 0.0
    %1112 = vmatprep.subr.mxu0 0.0
    %1113 = vmatpush1.msra.mxu0 0.0
    %1114 = vmatprep.subr.mxu0 0.0
    %1115 = vmatpush1.msra.mxu0 0.0
    %1116 = vmatprep.subr.mxu0 0.0
    %1117 = vmatpush1.msra.mxu0 0.0
    %1118 = vmatprep.subr.mxu0 0.0
    %1119 = vmatpush1.msra.mxu0 0.0
    %1120 = vmatprep.subr.mxu0 0.0
    %1121 = vmatpush1.msra.mxu0 0.0
    %1122 = vmatprep.subr.mxu0 0.0
    %1123 = vmatpush1.msra.mxu0 0.0
    %1124 = vmatprep.subr.mxu0 0.0
    %1125 = vmatpush1.msra.mxu0 0.0
    %1126 = vmatprep.subr.mxu0 0.0
    %1127 = vmatpush1.msra.mxu0 0.0
    %1128 = vmatprep.subr.mxu0 0.0
    %1129 = vmatpush1.msra.mxu0 0.0
    %1130 = vmatprep.subr.mxu0 0.0
    %1131 = vmatpush1.msra.mxu0 0.0
    %1132 = vmatprep.subr.mxu0 0.0
    %1133 = vmatpush1.msra.mxu0 0.0
    %1134 = vmatprep.subr.mxu0 0.0
    %1135 = vmatpush1.msra.mxu0 0.0
    %1136 = vmatprep.subr.mxu0 0.0
    %1137 = vmatpush1.msra.mxu0 0.0
    %1138 = vmatprep.subr.mxu0 0.0
    %1139 = vmatpush1.msra.mxu0 0.0
    %1140 = vmatprep.subr.mxu0 0.0
    %1141 = vmatpush1.msra.mxu0 0.0
    %1142 = vmatprep.subr.mxu0 0.0
    %1143 = vmatpush1.msra.mxu0 0.0
    %1144 = vmatprep.subr.mxu0 0.0
    %1145 = vmatpush1.msra.mxu0 0.0
    %1146 = vmatprep.subr.mxu0 0.0
    %1147 = vmatpush1.msra.mxu0 0.0
    %1148 = vmatprep.subr.mxu0 0.0
    %1149 = vmatpush1.msra.mxu0 0.0
    %1150 = vmatprep.subr.mxu0 0.0
    %1151 = vmatpush1.msra.mxu0 0.0
    %1152 = vmatprep.subr.mxu0 0.0
    %1153 = vmatpush1.msra.mxu0 0.0
    %1154 = vmatprep.subr.mxu0 0.0
    %1155 = vmatpush1.msra.mxu0 0.0
    %1156 = vmatprep.subr.mxu0 0.0
    %1157 = vmatpush1.msra.mxu0 0.0
    %1158 = vmatprep.subr.mxu0 0.0
    %1159 = vmatpush1.msra.mxu0 0.0
    %1160 = vmatprep.subr.mxu0 0.0
    %1161 = vmatpush1.msra.mxu0 0.0
    %1162 = vmatprep.subr.mxu0 0.0
    %1163 = vmatpush1.msra.mxu0 0.0
    %1164 = vmatprep.subr.mxu0 0.0
    %1165 = vmatpush1.msra.mxu0 0.0
    %1166 = vmatprep.subr.mxu0 0.0
    %1167 = vmatpush1.msra.mxu0 0.0
    %1168 = vmatprep.subr.mxu0 0.0
    %1169 = vmatpush1.msra.mxu0 0.0
    %1170 = vmatprep.mubr.f32.mxu0 0.0
    %1171 = vmatmul.mubr.f32.gmra.mrb[0].mxu0 %v184
    %v1172 = vpop.f32.mrb[0].mxu0
    %v1173 = vadd.f32 0.0, %v1172
    %v1174 = vpop.f32.mrb[0].mxu0
    %1175 = vmatprep.mubr.f32.mxu0 0.0
    %1176 = vmatmul.mubr.f32.gmra.mrb[0].mxu0 %v187
    %v1177 = vpop.f32.mrb[0].mxu0
    %v1178 = vadd.f32 0.0, %v1177
    %v1179 = vpop.f32.mrb[0].mxu0
    %1180 = vmatprep.mubr.f32.mxu0 0.0
    %1181 = vmatmul.mubr.f32.gmra.mrb[0].mxu0 %v190
    %v1182 = vpop.f32.mrb[0].mxu0
    %v1183 = vadd.f32 0.0, %v1182
    %v1184 = vpop.f32.mrb[0].mxu0
    %1185 = vmatprep.mubr.f32.mxu0 0.0
    %1186 = vmatmul.mubr.f32.gmra.mrb[0].mxu0 %v193
    %v1187 = vpop.f32.mrb[0].mxu0
    %v1188 = vadd.f32 0.0, %v1187
    %v1189 = vpop.f32.mrb[0].mxu0
    %1190 = vmatprep.mubr.f32.mxu0 0.0
    %1191 = vmatmul.mubr.f32.gmra.mrb[0].mxu0 %v196
    %v1192 = vpop.f32.mrb[0].mxu0
    %v1193 = vadd.f32 0.0, %v1192
    %v1194 = vpop.f32.mrb[0].mxu0
    %1195 = vmatprep.mubr.f32.mxu0 0.0
    %1196 = vmatmul.mubr.f32.gmra.mrb[0].mxu0 %v199
    %v1197 = vpop.f32.mrb[0].mxu0
    %v1198 = vadd.f32 0.0, %v1197
    %v1199 = vpop.f32.mrb[0].mxu0
    %1200 = vmatprep.mubr.f32.mxu0 0.0
    %1201 = vmatmul.mubr.f32.gmra.mrb[0].mxu0 %v202
    %v1202 = vpop.f32.mrb[0].mxu0
    %v1203 = vadd.f32 0.0, %v1202
    %v1204 = vpop.f32.mrb[0].mxu0
    %1205 = vmatprep.mubr.f32.mxu0 0.0
    %1206 = vmatmul.mubr.f32.gmra.mrb[0].mxu0 %v205
    %v1207 = vpop.f32.mrb[0].mxu0
    %v1208 = vadd.f32 0.0, %v1207
    %v1209 = vpop.f32.mrb[0].mxu0
    %1210 = vmatprep.mubr.f32.mxu0 0.0
    %1211 = vmatmul.mubr.f32.gmra.mrb[0].mxu0 %v208
    %v1212 = vpop.f32.mrb[0].mxu0
    %v1213 = vadd.f32 0.0, %v1212
    %v1214 = vpop.f32.mrb[0].mxu0
    %1215 = vmatprep.mubr.f32.mxu0 0.0
    %1216 = vmatmul.mubr.f32.gmra.mrb[0].mxu0 %v211
    %v1217 = vpop.f32.mrb[0].mxu0
    %v1218 = vadd.f32 0.0, %v1217
    %v1219 = vpop.f32.mrb[0].mxu0
    %1220 = vmatprep.mubr.f32.mxu0 0.0
    %1221 = vmatmul.mubr.f32.gmra.mrb[0].mxu0 %v214
    %v1222 = vpop.f32.mrb[0].mxu0
    %v1223 = vadd.f32 0.0, %v1222
    %v1224 = vpop.f32.mrb[0].mxu0
    %1225 = vmatprep.mubr.f32.mxu0 0.0
    %1226 = vmatmul.mubr.f32.gmra.mrb[0].mxu0 %v217
    %v1227 = vpop.f32.mrb[0].mxu0
    %v1228 = vadd.f32 0.0, %v1227
    %v1229 = vpop.f32.mrb[0].mxu0
    %1230 = vmatprep.mubr.f32.mxu0 0.0
    %1231 = vmatmul.mubr.f32.gmra.mrb[0].mxu0 %v220
    %v1232 = vpop.f32.mrb[0].mxu0
    %v1233 = vadd.f32 0.0, %v1232
    %v1234 = vpop.f32.mrb[0].mxu0
    %1235 = vmatprep.mubr.f32.mxu0 0.0
    %1236 = vmatmul.mubr.f32.gmra.mrb[0].mxu0 %v223
    %v1237 = vpop.f32.mrb[0].mxu0
    %v1238 = vadd.f32 0.0, %v1237
    %v1239 = vpop.f32.mrb[0].mxu0
    %1240 = vmatprep.mubr.f32.mxu0 0.0
    %1241 = vmatmul.mubr.f32.gmra.mrb[0].mxu0 %v226
    %v1242 = vpop.f32.mrb[0].mxu0
    %v1243 = vadd.f32 0.0, %v1242
    %v1244 = vpop.f32.mrb[0].mxu0
    %1245 = vmatprep.mubr.f32.mxu0 0.0
    %1246 = vmatmul.mubr.f32.gmra.mrb[0].mxu0 %v229
    %v1247 = vpop.f32.mrb[0].mxu0
    %v1248 = vadd.f32 0.0, %v1247
    %v1249 = vpop.f32.mrb[0].mxu0
    %1250 = vdwg.mxu0
    %v1251 = vsub.f32 %v939, %v1173
    %v1252 = vsub.f32 %v940, %v1178
    %v1253 = vsub.f32 %v941, %v1183
    %v1254 = vsub.f32 %v942, %v1188
    %v1255 = vsub.f32 %v943, %v1193
    %v1256 = vsub.f32 %v944, %v1198
    %v1257 = vsub.f32 %v945, %v1203
    %v1258 = vsub.f32 %v946, %v1208
    %v1259 = vsub.f32 %v947, %v1213
    %v1260 = vsub.f32 %v948, %v1218
    %v1261 = vsub.f32 %v949, %v1223
    %v1262 = vsub.f32 %v950, %v1228
    %v1263 = vsub.f32 %v951, %v1233
    %v1264 = vsub.f32 %v952, %v1238
    %v1265 = vsub.f32 %v953, %v1243
    %v1266 = vsub.f32 %v954, %v1248
    %v1267 = vmul.f32 %v1251, 1.442695
    %v1268 = vpow.pop %v1267
    %v1269 = vmul.f32 %v1252, 1.442695
    %v1270 = vpow.pop %v1269
    %v1271 = vmul.f32 %v1253, 1.442695
    %v1272 = vpow.pop %v1271
    %v1273 = vmul.f32 %v1254, 1.442695
    %v1274 = vpow.pop %v1273
    %v1275 = vmul.f32 %v1255, 1.442695
    %v1276 = vpow.pop %v1275
    %v1277 = vmul.f32 %v1256, 1.442695
    %v1278 = vpow.pop %v1277
    %v1279 = vmul.f32 %v1257, 1.442695
    %v1280 = vpow.pop %v1279
    %v1281 = vmul.f32 %v1258, 1.442695
    %v1282 = vpow.pop %v1281
    %v1283 = vmul.f32 %v1259, 1.442695
    %v1284 = vpow.pop %v1283
    %v1285 = vmul.f32 %v1260, 1.442695
    %v1286 = vpow.pop %v1285
    %v1287 = vmul.f32 %v1261, 1.442695
    %v1288 = vpow.pop %v1287
    %v1289 = vmul.f32 %v1262, 1.442695
    %v1290 = vpow.pop %v1289
    %v1291 = vmul.f32 %v1263, 1.442695
    %v1292 = vpow.pop %v1291
    %v1293 = vmul.f32 %v1264, 1.442695
    %v1294 = vpow.pop %v1293
    %v1295 = vmul.f32 %v1265, 1.442695
    %v1296 = vpow.pop %v1295
    %v1297 = vmul.f32 %v1266, 1.442695
    %v1298 = vpow.pop %v1297
    %v1299 = vld [vmem:[%s7] sm:$0xff]
    %v1300 = vld [vmem:[%s7 + $0x8] sm:$0xff]
    %1301 = vmatprep.subr.mxu0 0.0
    %1302 = vmatpush1.msra.mxu0 %v1268
    %1303 = vmatprep.subr.mxu0 0.0
    %1304 = vmatpush1.msra.mxu0 %v1270
    %1305 = vmatprep.subr.mxu0 0.0
    %1306 = vmatpush1.msra.mxu0 %v1272
    %1307 = vmatprep.subr.mxu0 0.0
    %1308 = vmatpush1.msra.mxu0 %v1274
    %1309 = vmatprep.subr.mxu0 0.0
    %1310 = vmatpush1.msra.mxu0 %v1276
    %1311 = vmatprep.subr.mxu0 0.0
    %1312 = vmatpush1.msra.mxu0 %v1278
    %1313 = vmatprep.subr.mxu0 0.0
    %1314 = vmatpush1.msra.mxu0 %v1280
    %1315 = vmatprep.subr.mxu0 0.0
    %1316 = vmatpush1.msra.mxu0 %v1282
    %1317 = vmatprep.subr.mxu0 0.0
    %1318 = vmatpush1.msra.mxu0 %v1284
    %1319 = vmatprep.subr.mxu0 0.0
    %1320 = vmatpush1.msra.mxu0 %v1286
    %1321 = vmatprep.subr.mxu0 0.0
    %1322 = vmatpush1.msra.mxu0 %v1288
    %1323 = vmatprep.subr.mxu0 0.0
    %1324 = vmatpush1.msra.mxu0 %v1290
    %1325 = vmatprep.subr.mxu0 0.0
    %1326 = vmatpush1.msra.mxu0 %v1292
    %1327 = vmatprep.subr.mxu0 0.0
    %1328 = vmatpush1.msra.mxu0 %v1294
    %1329 = vmatprep.subr.mxu0 0.0
    %1330 = vmatpush1.msra.mxu0 %v1296
    %1331 = vmatprep.subr.mxu0 0.0
    %1332 = vmatpush1.msra.mxu0 %v1298
    %1333 = vmatprep.subr.mxu0 0.0
    %1334 = vmatpush1.msra.mxu0 0.0
    %1335 = vmatprep.subr.mxu0 0.0
    %1336 = vmatpush1.msra.mxu0 0.0
    %1337 = vmatprep.subr.mxu0 0.0
    %1338 = vmatpush1.msra.mxu0 0.0
    %1339 = vmatprep.subr.mxu0 0.0
    %1340 = vmatpush1.msra.mxu0 0.0
    %1341 = vmatprep.subr.mxu0 0.0
    %1342 = vmatpush1.msra.mxu0 0.0
    %1343 = vmatprep.subr.mxu0 0.0
    %1344 = vmatpush1.msra.mxu0 0.0
    %1345 = vmatprep.subr.mxu0 0.0
    %1346 = vmatpush1.msra.mxu0 0.0
    %1347 = vmatprep.subr.mxu0 0.0
    %1348 = vmatpush1.msra.mxu0 0.0
    %1349 = vmatprep.subr.mxu0 0.0
    %1350 = vmatpush1.msra.mxu0 0.0
    %1351 = vmatprep.subr.mxu0 0.0
    %1352 = vmatpush1.msra.mxu0 0.0
    %1353 = vmatprep.subr.mxu0 0.0
    %1354 = vmatpush1.msra.mxu0 0.0
    %1355 = vmatprep.subr.mxu0 0.0
    %1356 = vmatpush1.msra.mxu0 0.0
    %1357 = vmatprep.subr.mxu0 0.0
    %1358 = vmatpush1.msra.mxu0 0.0
    %1359 = vmatprep.subr.mxu0 0.0
    %1360 = vmatpush1.msra.mxu0 0.0
    %1361 = vmatprep.subr.mxu0 0.0
    %1362 = vmatpush1.msra.mxu0 0.0
    %1363 = vmatprep.subr.mxu0 0.0
    %1364 = vmatpush1.msra.mxu0 0.0
    %1365 = vmatprep.mubr.f32.mxu0 0.0
    %1366 = vmatmul.mubr.f32.gmra.mrb[0].mxu0 %v1299
    %v1367 = vpop.f32.mrb[0].mxu0
    %v1368 = vadd.f32 0.0, %v1367
    %v1369 = vpop.f32.mrb[0].mxu0
    %1370 = vmatprep.mubr.f32.mxu0 0.0
    %1371 = vmatmul.mubr.f32.gmra.mrb[0].mxu0 %v1300
    %v1372 = vpop.f32.mrb[0].mxu0
    %v1373 = vadd.f32 0.0, %v1372
    %v1374 = vpop.f32.mrb[0].mxu0
    %1375 = vdwg.mxu0
    %v1376 = vld [vmem:[%s4] sm:$0xff]
    %v1377 = vld [vmem:[%s4 + $0x8] sm:$0xff]
    %v1379 = vsel %vm182, %v1268, 0
    %v1382 = vsel %vm182, %v1270, 0
    %v1385 = vsel %vm182, %v1272, 0
    %v1388 = vsel %vm182, %v1274, 0
    %v1391 = vsel %vm182, %v1276, 0
    %v1394 = vsel %vm182, %v1278, 0
    %v1397 = vsel %vm182, %v1280, 0
    %v1400 = vsel %vm182, %v1282, 0
    %v1403 = vsel %vm182, %v1284, 0
    %v1406 = vsel %vm182, %v1286, 0
    %v1409 = vsel %vm182, %v1288, 0
    %v1412 = vsel %vm182, %v1290, 0
    %v1415 = vsel %vm182, %v1292, 0
    %v1418 = vsel %vm182, %v1294, 0
    %v1421 = vsel %vm182, %v1296, 0
    %v1424 = vsel %vm182, %v1298, 0
    %1426 = vmatprep.subr.mxu0 0.0
    %1427 = vmatpush1.msra.mxu0 %v1376
    %1428 = vmatprep.subr.mxu0 0.0
    %1429 = vmatpush1.msra.mxu0 %v1377
    %1430 = vmatprep.subr.mxu0 0.0
    %1431 = vmatpush1.msra.mxu0 0.0
    %1432 = vmatprep.subr.mxu0 0.0
    %1433 = vmatpush1.msra.mxu0 0.0
    %1434 = vmatprep.subr.mxu0 0.0
    %1435 = vmatpush1.msra.mxu0 0.0
    %1436 = vmatprep.subr.mxu0 0.0
    %1437 = vmatpush1.msra.mxu0 0.0
    %1438 = vmatprep.subr.mxu0 0.0
    %1439 = vmatpush1.msra.mxu0 0.0
    %1440 = vmatprep.subr.mxu0 0.0
    %1441 = vmatpush1.msra.mxu0 0.0
    %1442 = vmatprep.subr.mxu0 0.0
    %1443 = vmatpush1.msra.mxu0 0.0
    %1444 = vmatprep.subr.mxu0 0.0
    %1445 = vmatpush1.msra.mxu0 0.0
    %1446 = vmatprep.subr.mxu0 0.0
    %1447 = vmatpush1.msra.mxu0 0.0
    %1448 = vmatprep.subr.mxu0 0.0
    %1449 = vmatpush1.msra.mxu0 0.0
    %1450 = vmatprep.subr.mxu0 0.0
    %1451 = vmatpush1.msra.mxu0 0.0
    %1452 = vmatprep.subr.mxu0 0.0
    %1453 = vmatpush1.msra.mxu0 0.0
    %1454 = vmatprep.subr.mxu0 0.0
    %1455 = vmatpush1.msra.mxu0 0.0
    %1456 = vmatprep.subr.mxu0 0.0
    %1457 = vmatpush1.msra.mxu0 0.0
    %1458 = vmatprep.subr.mxu0 0.0
    %1459 = vmatpush1.msra.mxu0 0.0
    %1460 = vmatprep.subr.mxu0 0.0
    %1461 = vmatpush1.msra.mxu0 0.0
    %1462 = vmatprep.subr.mxu0 0.0
    %1463 = vmatpush1.msra.mxu0 0.0
    %1464 = vmatprep.subr.mxu0 0.0
    %1465 = vmatpush1.msra.mxu0 0.0
    %1466 = vmatprep.subr.mxu0 0.0
    %1467 = vmatpush1.msra.mxu0 0.0
    %1468 = vmatprep.subr.mxu0 0.0
    %1469 = vmatpush1.msra.mxu0 0.0
    %1470 = vmatprep.subr.mxu0 0.0
    %1471 = vmatpush1.msra.mxu0 0.0
    %1472 = vmatprep.subr.mxu0 0.0
    %1473 = vmatpush1.msra.mxu0 0.0
    %1474 = vmatprep.subr.mxu0 0.0
    %1475 = vmatpush1.msra.mxu0 0.0
    %1476 = vmatprep.subr.mxu0 0.0
    %1477 = vmatpush1.msra.mxu0 0.0
    %1478 = vmatprep.subr.mxu0 0.0
    %1479 = vmatpush1.msra.mxu0 0.0
    %1480 = vmatprep.subr.mxu0 0.0
    %1481 = vmatpush1.msra.mxu0 0.0
    %1482 = vmatprep.subr.mxu0 0.0
    %1483 = vmatpush1.msra.mxu0 0.0
    %1484 = vmatprep.subr.mxu0 0.0
    %1485 = vmatpush1.msra.mxu0 0.0
    %1486 = vmatprep.subr.mxu0 0.0
    %1487 = vmatpush1.msra.mxu0 0.0
    %1488 = vmatprep.subr.mxu0 0.0
    %1489 = vmatpush1.msra.mxu0 0.0
    %1490 = vmatprep.mubr.f32.mxu0 0.0
    %1491 = vmatmul.mubr.f32.gmra.mrb[0].mxu0 %v1379
    %v1492 = vpop.f32.mrb[0].mxu0
    %v1493 = vadd.f32 0.0, %v1492
    %v1494 = vpop.f32.mrb[0].mxu0
    %1495 = vmatprep.mubr.f32.mxu0 0.0
    %1496 = vmatmul.mubr.f32.gmra.mrb[0].mxu0 %v1382
    %v1497 = vpop.f32.mrb[0].mxu0
    %v1498 = vadd.f32 0.0, %v1497
    %v1499 = vpop.f32.mrb[0].mxu0
    %1500 = vmatprep.mubr.f32.mxu0 0.0
    %1501 = vmatmul.mubr.f32.gmra.mrb[0].mxu0 %v1385
    %v1502 = vpop.f32.mrb[0].mxu0
    %v1503 = vadd.f32 0.0, %v1502
    %v1504 = vpop.f32.mrb[0].mxu0
    %1505 = vmatprep.mubr.f32.mxu0 0.0
    %1506 = vmatmul.mubr.f32.gmra.mrb[0].mxu0 %v1388
    %v1507 = vpop.f32.mrb[0].mxu0
    %v1508 = vadd.f32 0.0, %v1507
    %v1509 = vpop.f32.mrb[0].mxu0
    %1510 = vmatprep.mubr.f32.mxu0 0.0
    %1511 = vmatmul.mubr.f32.gmra.mrb[0].mxu0 %v1391
    %v1512 = vpop.f32.mrb[0].mxu0
    %v1513 = vadd.f32 0.0, %v1512
    %v1514 = vpop.f32.mrb[0].mxu0
    %1515 = vmatprep.mubr.f32.mxu0 0.0
    %1516 = vmatmul.mubr.f32.gmra.mrb[0].mxu0 %v1394
    %v1517 = vpop.f32.mrb[0].mxu0
    %v1518 = vadd.f32 0.0, %v1517
    %v1519 = vpop.f32.mrb[0].mxu0
    %1520 = vmatprep.mubr.f32.mxu0 0.0
    %1521 = vmatmul.mubr.f32.gmra.mrb[0].mxu0 %v1397
    %v1522 = vpop.f32.mrb[0].mxu0
    %v1523 = vadd.f32 0.0, %v1522
    %v1524 = vpop.f32.mrb[0].mxu0
    %1525 = vmatprep.mubr.f32.mxu0 0.0
    %1526 = vmatmul.mubr.f32.gmra.mrb[0].mxu0 %v1400
    %v1527 = vpop.f32.mrb[0].mxu0
    %v1528 = vadd.f32 0.0, %v1527
    %v1529 = vpop.f32.mrb[0].mxu0
    %1530 = vmatprep.mubr.f32.mxu0 0.0
    %1531 = vmatmul.mubr.f32.gmra.mrb[0].mxu0 %v1403
    %v1532 = vpop.f32.mrb[0].mxu0
    %v1533 = vadd.f32 0.0, %v1532
    %v1534 = vpop.f32.mrb[0].mxu0
    %1535 = vmatprep.mubr.f32.mxu0 0.0
    %1536 = vmatmul.mubr.f32.gmra.mrb[0].mxu0 %v1406
    %v1537 = vpop.f32.mrb[0].mxu0
    %v1538 = vadd.f32 0.0, %v1537
    %v1539 = vpop.f32.mrb[0].mxu0
    %1540 = vmatprep.mubr.f32.mxu0 0.0
    %1541 = vmatmul.mubr.f32.gmra.mrb[0].mxu0 %v1409
    %v1542 = vpop.f32.mrb[0].mxu0
    %v1543 = vadd.f32 0.0, %v1542
    %v1544 = vpop.f32.mrb[0].mxu0
    %1545 = vmatprep.mubr.f32.mxu0 0.0
    %1546 = vmatmul.mubr.f32.gmra.mrb[0].mxu0 %v1412
    %v1547 = vpop.f32.mrb[0].mxu0
    %v1548 = vadd.f32 0.0, %v1547
    %v1549 = vpop.f32.mrb[0].mxu0
    %1550 = vmatprep.mubr.f32.mxu0 0.0
    %1551 = vmatmul.mubr.f32.gmra.mrb[0].mxu0 %v1415
    %v1552 = vpop.f32.mrb[0].mxu0
    %v1553 = vadd.f32 0.0, %v1552
    %v1554 = vpop.f32.mrb[0].mxu0
    %1555 = vmatprep.mubr.f32.mxu0 0.0
    %1556 = vmatmul.mubr.f32.gmra.mrb[0].mxu0 %v1418
    %v1557 = vpop.f32.mrb[0].mxu0
    %v1558 = vadd.f32 0.0, %v1557
    %v1559 = vpop.f32.mrb[0].mxu0
    %1560 = vmatprep.mubr.f32.mxu0 0.0
    %1561 = vmatmul.mubr.f32.gmra.mrb[0].mxu0 %v1421
    %v1562 = vpop.f32.mrb[0].mxu0
    %v1563 = vadd.f32 0.0, %v1562
    %v1564 = vpop.f32.mrb[0].mxu0
    %1565 = vmatprep.mubr.f32.mxu0 0.0
    %1566 = vmatmul.mubr.f32.gmra.mrb[0].mxu0 %v1424
    %v1567 = vpop.f32.mrb[0].mxu0
    %v1568 = vadd.f32 0.0, %v1567
    %v1569 = vpop.f32.mrb[0].mxu0
    %1570 = vdwg.mxu0
    %v1571 = vmul.f32 %v1493, %v644
    %v1572 = vmul.f32 %v1498, %v649
    %v1573 = vmul.f32 %v1503, %v654
    %v1574 = vmul.f32 %v1508, %v659
    %v1575 = vmul.f32 %v1513, %v664
    %v1576 = vmul.f32 %v1518, %v669
    %v1577 = vmul.f32 %v1523, %v674
    %v1578 = vmul.f32 %v1528, %v679
    %v1579 = vmul.f32 %v1533, %v684
    %v1580 = vmul.f32 %v1538, %v689
    %v1581 = vmul.f32 %v1543, %v694
    %v1582 = vmul.f32 %v1548, %v699
    %v1583 = vmul.f32 %v1553, %v704
    %v1584 = vmul.f32 %v1558, %v709
    %v1585 = vmul.f32 %v1563, %v714
    %v1586 = vmul.f32 %v1568, %v719
    %1587 = vmatprep.subr.mxu0 0.0
    %1588 = vmatpush1.msra.mxu0 %v1571
    %1589 = vmatprep.subr.mxu0 0.0
    %1590 = vmatpush1.msra.mxu0 %v1572
    %1591 = vmatprep.subr.mxu0 0.0
    %1592 = vmatpush1.msra.mxu0 %v1573
    %1593 = vmatprep.subr.mxu0 0.0
    %1594 = vmatpush1.msra.mxu0 %v1574
    %1595 = vmatprep.subr.mxu0 0.0
    %1596 = vmatpush1.msra.mxu0 %v1575
    %1597 = vmatprep.subr.mxu0 0.0
    %1598 = vmatpush1.msra.mxu0 %v1576
    %1599 = vmatprep.subr.mxu0 0.0
    %1600 = vmatpush1.msra.mxu0 %v1577
    %1601 = vmatprep.subr.mxu0 0.0
    %1602 = vmatpush1.msra.mxu0 %v1578
    %1603 = vmatprep.subr.mxu0 0.0
    %1604 = vmatpush1.msra.mxu0 %v1579
    %1605 = vmatprep.subr.mxu0 0.0
    %1606 = vmatpush1.msra.mxu0 %v1580
    %1607 = vmatprep.subr.mxu0 0.0
    %1608 = vmatpush1.msra.mxu0 %v1581
    %1609 = vmatprep.subr.mxu0 0.0
    %1610 = vmatpush1.msra.mxu0 %v1582
    %1611 = vmatprep.subr.mxu0 0.0
    %1612 = vmatpush1.msra.mxu0 %v1583
    %1613 = vmatprep.subr.mxu0 0.0
    %1614 = vmatpush1.msra.mxu0 %v1584
    %1615 = vmatprep.subr.mxu0 0.0
    %1616 = vmatpush1.msra.mxu0 %v1585
    %1617 = vmatprep.subr.mxu0 0.0
    %1618 = vmatpush1.msra.mxu0 %v1586
    %1619 = vmatprep.subr.mxu0 0.0
    %1620 = vmatpush1.msra.mxu0 0.0
    %1621 = vmatprep.subr.mxu0 0.0
    %1622 = vmatpush1.msra.mxu0 0.0
    %1623 = vmatprep.subr.mxu0 0.0
    %1624 = vmatpush1.msra.mxu0 0.0
    %1625 = vmatprep.subr.mxu0 0.0
    %1626 = vmatpush1.msra.mxu0 0.0
    %1627 = vmatprep.subr.mxu0 0.0
    %1628 = vmatpush1.msra.mxu0 0.0
    %1629 = vmatprep.subr.mxu0 0.0
    %1630 = vmatpush1.msra.mxu0 0.0
    %1631 = vmatprep.subr.mxu0 0.0
    %1632 = vmatpush1.msra.mxu0 0.0
    %1633 = vmatprep.subr.mxu0 0.0
    %1634 = vmatpush1.msra.mxu0 0.0
    %1635 = vmatprep.subr.mxu0 0.0
    %1636 = vmatpush1.msra.mxu0 0.0
    %1637 = vmatprep.subr.mxu0 0.0
    %1638 = vmatpush1.msra.mxu0 0.0
    %1639 = vmatprep.subr.mxu0 0.0
    %1640 = vmatpush1.msra.mxu0 0.0
    %1641 = vmatprep.subr.mxu0 0.0
    %1642 = vmatpush1.msra.mxu0 0.0
    %1643 = vmatprep.subr.mxu0 0.0
    %1644 = vmatpush1.msra.mxu0 0.0
    %1645 = vmatprep.subr.mxu0 0.0
    %1646 = vmatpush1.msra.mxu0 0.0
    %1647 = vmatprep.subr.mxu0 0.0
    %1648 = vmatpush1.msra.mxu0 0.0
    %1649 = vmatprep.subr.mxu0 0.0
    %1650 = vmatpush1.msra.mxu0 0.0
    %1651 = vmatprep.mubr.f32.mxu0 0.0
    %1652 = vmatmul.mubr.f32.gmra.mrb[0].mxu0 %v1299
    %v1653 = vpop.f32.mrb[0].mxu0
    %v1654 = vadd.f32 0.0, %v1653
    %v1655 = vpop.f32.mrb[0].mxu0
    %1656 = vmatprep.mubr.f32.mxu0 0.0
    %1657 = vmatmul.mubr.f32.gmra.mrb[0].mxu0 %v1300
    %v1658 = vpop.f32.mrb[0].mxu0
    %v1659 = vadd.f32 0.0, %v1658
    %v1660 = vpop.f32.mrb[0].mxu0
    %1661 = vdwg.mxu0
    %v1663 = vsel %vm182, %v1368, 0
    %v1666 = vsel %vm182, %v1373, 0
    %1668 = vmatprep.subr.mxu0 0.0
    %1669 = vmatpush1.msra.mxu0 %v1376
    %1670 = vmatprep.subr.mxu0 0.0
    %1671 = vmatpush1.msra.mxu0 %v1377
    %1672 = vmatprep.subr.mxu0 0.0
    %1673 = vmatpush1.msra.mxu0 0.0
    %1674 = vmatprep.subr.mxu0 0.0
    %1675 = vmatpush1.msra.mxu0 0.0
    %1676 = vmatprep.subr.mxu0 0.0
    %1677 = vmatpush1.msra.mxu0 0.0
    %1678 = vmatprep.subr.mxu0 0.0
    %1679 = vmatpush1.msra.mxu0 0.0
    %1680 = vmatprep.subr.mxu0 0.0
    %1681 = vmatpush1.msra.mxu0 0.0
    %1682 = vmatprep.subr.mxu0 0.0
    %1683 = vmatpush1.msra.mxu0 0.0
    %1684 = vmatprep.subr.mxu0 0.0
    %1685 = vmatpush1.msra.mxu0 0.0
    %1686 = vmatprep.subr.mxu0 0.0
    %1687 = vmatpush1.msra.mxu0 0.0
    %1688 = vmatprep.subr.mxu0 0.0
    %1689 = vmatpush1.msra.mxu0 0.0
    %1690 = vmatprep.subr.mxu0 0.0
    %1691 = vmatpush1.msra.mxu0 0.0
    %1692 = vmatprep.subr.mxu0 0.0
    %1693 = vmatpush1.msra.mxu0 0.0
    %1694 = vmatprep.subr.mxu0 0.0
    %1695 = vmatpush1.msra.mxu0 0.0
    %1696 = vmatprep.subr.mxu0 0.0
    %1697 = vmatpush1.msra.mxu0 0.0
    %1698 = vmatprep.subr.mxu0 0.0
    %1699 = vmatpush1.msra.mxu0 0.0
    %1700 = vmatprep.subr.mxu0 0.0
    %1701 = vmatpush1.msra.mxu0 0.0
    %1702 = vmatprep.subr.mxu0 0.0
    %1703 = vmatpush1.msra.mxu0 0.0
    %1704 = vmatprep.subr.mxu0 0.0
    %1705 = vmatpush1.msra.mxu0 0.0
    %1706 = vmatprep.subr.mxu0 0.0
    %1707 = vmatpush1.msra.mxu0 0.0
    %1708 = vmatprep.subr.mxu0 0.0
    %1709 = vmatpush1.msra.mxu0 0.0
    %1710 = vmatprep.subr.mxu0 0.0
    %1711 = vmatpush1.msra.mxu0 0.0
    %1712 = vmatprep.subr.mxu0 0.0
    %1713 = vmatpush1.msra.mxu0 0.0
    %1714 = vmatprep.subr.mxu0 0.0
    %1715 = vmatpush1.msra.mxu0 0.0
    %1716 = vmatprep.subr.mxu0 0.0
    %1717 = vmatpush1.msra.mxu0 0.0
    %1718 = vmatprep.subr.mxu0 0.0
    %1719 = vmatpush1.msra.mxu0 0.0
    %1720 = vmatprep.subr.mxu0 0.0
    %1721 = vmatpush1.msra.mxu0 0.0
    %1722 = vmatprep.subr.mxu0 0.0
    %1723 = vmatpush1.msra.mxu0 0.0
    %1724 = vmatprep.subr.mxu0 0.0
    %1725 = vmatpush1.msra.mxu0 0.0
    %1726 = vmatprep.subr.mxu0 0.0
    %1727 = vmatpush1.msra.mxu0 0.0
    %1728 = vmatprep.subr.mxu0 0.0
    %1729 = vmatpush1.msra.mxu0 0.0
    %1730 = vmatprep.subr.mxu0 0.0
    %1731 = vmatpush1.msra.mxu0 0.0
    %1732 = vmatprep.mubr.f32.mxu0 0.0
    %1733 = vmatmul.mubr.f32.gmra.mrb[0].mxu0 %v1663
    %v1734 = vpop.f32.mrb[0].mxu0
    %v1735 = vadd.f32 0.0, %v1734
    %v1736 = vpop.f32.mrb[0].mxu0
    %1737 = vmatprep.mubr.f32.mxu0 0.0
    %1738 = vmatmul.mubr.f32.gmra.mrb[0].mxu0 %v1666
    %v1739 = vpop.f32.mrb[0].mxu0
    %v1740 = vadd.f32 0.0, %v1739
    %v1741 = vpop.f32.mrb[0].mxu0
    %1742 = vdwg.mxu0
    %v1743 = vrcp.pop %v1735
    %v1744 = vmul.f32 %v1654, %v1743
    %v1745 = vrcp.pop %v1740
    %v1746 = vmul.f32 %v1659, %v1745
    %v1747 = vld [vmem:[%s8] sm:$0xff]
    %v1748 = vld [vmem:[%s8 + $0x8] sm:$0xff]
    %v1749 = vld [vmem:[%s8 + $0x10] sm:$0xff]
    %v1750 = vld [vmem:[%s8 + $0x18] sm:$0xff]
    %v1751 = vld [vmem:[%s8 + $0x20] sm:$0xff]
    %v1752 = vld [vmem:[%s8 + $0x28] sm:$0xff]
    %v1753 = vld [vmem:[%s8 + $0x30] sm:$0xff]
    %v1754 = vld [vmem:[%s8 + $0x38] sm:$0xff]
    %v1755 = vld [vmem:[%s9] sm:$0x1]
    %v1757 = vlaneseq
    %v1758 = vshrl.u32 %v1757, 7
    %v1759 = vsub.s32 0, %v1758
    %v1760 = vrot.slane %v1755, %v1759
    %v1763 = vsel %vm66, %v1744, 0
    %v1766 = vsel %vm66, %v1746, 0
    %1768 = vmatprep.subr.mxu0 0.0
    %1769 = vmatpush1.msra.mxu0 %v1747
    %1770 = vmatprep.subr.mxu0 0.0
    %1771 = vmatpush1.msra.mxu0 %v1748
    %1772 = vmatprep.subr.mxu0 0.0
    %1773 = vmatpush1.msra.mxu0 %v1749
    %1774 = vmatprep.subr.mxu0 0.0
    %1775 = vmatpush1.msra.mxu0 %v1750
    %1776 = vmatprep.subr.mxu0 0.0
    %1777 = vmatpush1.msra.mxu0 %v1751
    %1778 = vmatprep.subr.mxu0 0.0
    %1779 = vmatpush1.msra.mxu0 %v1752
    %1780 = vmatprep.subr.mxu0 0.0
    %1781 = vmatpush1.msra.mxu0 %v1753
    %1782 = vmatprep.subr.mxu0 0.0
    %1783 = vmatpush1.msra.mxu0 %v1754
    %1784 = vmatprep.subr.mxu0 0.0
    %1785 = vmatpush1.msra.mxu0 0.0
    %1786 = vmatprep.subr.mxu0 0.0
    %1787 = vmatpush1.msra.mxu0 0.0
    %1788 = vmatprep.subr.mxu0 0.0
    %1789 = vmatpush1.msra.mxu0 0.0
    %1790 = vmatprep.subr.mxu0 0.0
    %1791 = vmatpush1.msra.mxu0 0.0
    %1792 = vmatprep.subr.mxu0 0.0
    %1793 = vmatpush1.msra.mxu0 0.0
    %1794 = vmatprep.subr.mxu0 0.0
    %1795 = vmatpush1.msra.mxu0 0.0
    %1796 = vmatprep.subr.mxu0 0.0
    %1797 = vmatpush1.msra.mxu0 0.0
    %1798 = vmatprep.subr.mxu0 0.0
    %1799 = vmatpush1.msra.mxu0 0.0
    %1800 = vmatprep.subr.mxu0 0.0
    %1801 = vmatpush1.msra.mxu0 0.0
    %1802 = vmatprep.subr.mxu0 0.0
    %1803 = vmatpush1.msra.mxu0 0.0
    %1804 = vmatprep.subr.mxu0 0.0
    %1805 = vmatpush1.msra.mxu0 0.0
    %1806 = vmatprep.subr.mxu0 0.0
    %1807 = vmatpush1.msra.mxu0 0.0
    %1808 = vmatprep.subr.mxu0 0.0
    %1809 = vmatpush1.msra.mxu0 0.0
    %1810 = vmatprep.subr.mxu0 0.0
    %1811 = vmatpush1.msra.mxu0 0.0
    %1812 = vmatprep.subr.mxu0 0.0
    %1813 = vmatpush1.msra.mxu0 0.0
    %1814 = vmatprep.subr.mxu0 0.0
    %1815 = vmatpush1.msra.mxu0 0.0
    %1816 = vmatprep.subr.mxu0 0.0
    %1817 = vmatpush1.msra.mxu0 0.0
    %1818 = vmatprep.subr.mxu0 0.0
    %1819 = vmatpush1.msra.mxu0 0.0
    %1820 = vmatprep.subr.mxu0 0.0
    %1821 = vmatpush1.msra.mxu0 0.0
    %1822 = vmatprep.subr.mxu0 0.0
    %1823 = vmatpush1.msra.mxu0 0.0
    %1824 = vmatprep.subr.mxu0 0.0
    %1825 = vmatpush1.msra.mxu0 0.0
    %1826 = vmatprep.subr.mxu0 0.0
    %1827 = vmatpush1.msra.mxu0 0.0
    %1828 = vmatprep.subr.mxu0 0.0
    %1829 = vmatpush1.msra.mxu0 0.0
    %1830 = vmatprep.subr.mxu0 0.0
    %1831 = vmatpush1.msra.mxu0 0.0
    %1832 = vmatprep.mubr.f32.mxu0 0.0
    %1833 = vmatmul.mubr.f32.gmra.mrb[0].mxu0 %v1763
    %v1834 = vpop.f32.mrb[0].mxu0
    %v1835 = vadd.f32 %v1760, %v1834
    %v1836 = vpop.f32.mrb[0].mxu0
    %1837 = vmatprep.mubr.f32.mxu0 0.0
    %1838 = vmatmul.mubr.f32.gmra.mrb[0].mxu0 %v1766
    %v1839 = vpop.f32.mrb[0].mxu0
    %v1840 = vadd.f32 %v1760, %v1839
    %v1841 = vpop.f32.mrb[0].mxu0
    %1842 = vdwg.mxu0
    %1843 = vst.msk [vmem:[#allocation2] sm:$0xff] %vm66, %v1835
    %1844 = vst.msk [vmem:[#allocation2 + $0x8] sm:$0xff] %vm66, %v1840
    // Predicated region
    $region42: #{attention_forward.1} parent=1 // pred_check
      _
    $region43: #{attention_forward.1} parent=1 // pred_check_branch
      %1846 = sbr.rel (0) target = $region45
    $region44: #{attention_forward.1} parent=1 // pred_region
      %s1848 = ssub.s32 256, 256
      %1849 = vsyncadd [#allocation3], %s1848
      %s1850 = sshll.u32 [#allocation2], 4
      %s1851 = int_to_ptr.vmem [resolvable:$true] %s1850
      %1856 = dma.vmem_to_hbm [thread:$0]  %s1851, 256, %s10, [#allocation3], 128, 128, 8
    $region45: #{attention_forward.1} parent=1 // pred_fallthru
      _
    // Predicated region
    $region46: #{attention_forward.1} parent=1 // pred_check
      _
    $region47: #{attention_forward.1} parent=1 // pred_check_branch
      %1858 = sbr.rel (0) target = $region49
    $region48: #{attention_forward.1} parent=1 // pred_region
      %1859 = dma.done [#allocation3], 256
    $region49: #{attention_forward.1} parent=1 // pred_fallthru
      _
    %1860 = vsyncpa [#allocation3], 1

</llo_original>
